<compile_context>
chip_gen: v7x
topology: tpu7x:2x2x1
jax: 0.10.0
libtpu: 0.0.40
codegen_flags: <defaults>
</compile_context>

<pallas_src>
import jax
import jax.numpy as jnp
from jax import lax
from jax.experimental import pallas as pl
from jax.experimental.pallas import tpu as pltpu

C1 = 0.01 ** 2
C2 = 0.03 ** 2


def _ssim_kernel(x_ref, y_ref, o_ref):
    # x_ref / y_ref / o_ref: (B, H, W) — B whole image planes per grid step.
    B, H, W = x_ref.shape
    x = x_ref[...].astype(jnp.float32)
    y = y_ref[...].astype(jnp.float32)

    # Left/right reflect-boundary masks (lane axis only — the vertical
    # reflect boundary is folded into the MXU operator below, so the row /
    # top / bottom masks of the previous version are gone entirely).
    col = lax.broadcasted_iota(jnp.int32, (B, H, W), 2)
    lef = col == 0
    rig = col == W - 1

    def hsum3(a):
        # 3-tap sum along the lane axis with a 1-px reflect boundary.
        # prev[j] = a[j-1], nxt[j] = a[j+1]; the wrapped values only show up
        # at boundary columns, where the selects substitute the reflected
        # neighbor (reflect(1): neighbor of j=0 is a[1], of j=W-1 is a[W-2]).
        prev = pltpu.roll(a, 1, axis=2)
        nxt = pltpu.roll(a, W - 1, axis=2)
        return jnp.where(lef, nxt, prev) + a + jnp.where(rig, prev, nxt)

    # Constant (H, H) vertical 3-tap reflect operator: tridiagonal ones with
    # the reflect(1) boundary folded in as vmat[0, 1] = vmat[H-1, H-2] = 2.
    ri = lax.broadcasted_iota(jnp.int32, (H, H), 0)
    ci = lax.broadcasted_iota(jnp.int32, (H, H), 1)
    d = ri - ci
    tri = jnp.where((d >= -1) & (d <= 1), 1.0, 0.0)
    refl = jnp.where(((ri == 0) & (ci == 1)) | ((ri == H - 1) & (ci == H - 2)),
                     1.0, 0.0)
    vmat = (tri + refl).astype(jnp.float32)
    vmat_b = jnp.broadcast_to(vmat, (B, H, H))     # hoisted once, reused 5x

    def pool9(a):
        # Raw 3x3 reflect-padded box sum
        #   == 9 * AvgPool2d(3, 1)(ReflectionPad2d(1)(a)).
        # Lane-axis sum on XLU rolls, vertical sum on the MXU.
        return jnp.einsum("bhk,bkw->bhw", vmat_b, hsum3(a),
                          preferred_element_type=jnp.float32)

    sx = pool9(x)
    sy = pool9(y)
    sxx = pool9(x * x)
    syy = pool9(y * y)
    sxy = pool9(x * y)

    # 1/9 normalization folded into the constants.  With S = 9 * pool:
    #   81*(2 mu_x mu_y + C1)        = 2 Sx Sy + 81 C1
    #   81*(2 sigma_xy + C2)         = 18 Sxy - 2 Sx Sy + 81 C2
    #   81*(mu_x^2 + mu_y^2 + C1)    = Sx^2 + Sy^2 + 81 C1
    #   81*(sigma_x + sigma_y + C2)  = 9 (Sxx + Syy) - (Sx^2 + Sy^2) + 81 C2
    # and the 81^2 cancels in the SSIM_n / SSIM_d ratio.
    two_sxsy = sx * sy
    two_sxsy = two_sxsy + two_sxsy
    ssim_n = (two_sxsy + 81.0 * C1) * (18.0 * sxy - two_sxsy + 81.0 * C2)
    sq = sx * sx + sy * sy
    ssim_d = (sq + 81.0 * C1) * (9.0 * (sxx + syy) - sq + 81.0 * C2)

    # EUP approximate reciprocal + one Newton step instead of a VPU divide.
    inv_d = pl.reciprocal(ssim_d, approx=True)
    inv_d = inv_d * (2.0 - ssim_d * inv_d)

    out = jnp.clip((1.0 - ssim_n * inv_d) * 0.5, 0.0, 1.0)
    o_ref[...] = out.astype(o_ref.dtype)


def _vmem_limit_bytes():
    """Per-generation scoped-VMEM budget (~96 MiB on 128-MiB v5e/v6e,
    ~48 MiB on 64-MiB v7x), with a v7x-safe fallback."""
    try:
        cap = int(pltpu.get_tpu_info().vmem_capacity_bytes)
    except Exception:
        cap = 64 * 1024 * 1024
    return int(min(cap - cap // 4, 96 * 1024 * 1024))


def _pick_planes_per_step(num_planes, H, W, itemsize, vmem_limit):
    """Pick the per-step plane batch B (must divide num_planes).

    Preference order:
      1. grid >= 4 steps and even (2 TensorCores x >= 2 steps each on v7x,
         keeps prefetch-next / writeback-prev overlap on every core),
      2. grid >= 2 steps,
      3. anything that fits VMEM;
    within a tier the largest B (biggest DMAs, least per-step overhead) wins.
    """
    # Rough per-plane working set: ~14 live f32 temporaries at peak, the
    # double-buffered in/out blocks (3 arrays x 2 buffers), and the broadcast
    # (H, H) vertical-sum operator.
    per_plane = 14 * H * W * 4 + 6 * H * W * itemsize + H * H * 4
    max_b = max(1, vmem_limit // per_plane)
    cands = [b for b in range(1, num_planes + 1)
             if num_planes % b == 0 and b <= max_b]
    if not cands:
        cands = [1]
    steps = lambda b: num_planes // b
    tiers = (
        [b for b in cands if steps(b) >= 4 and steps(b) % 2 == 0],
        [b for b in cands if steps(b) >= 2],
        cands,
    )
    for tier in tiers:
        if tier:
            return max(tier)
    return 1


def ssim_pallas(x, y):
    """x, y: (N, C, H, W). Returns the (N, C, H, W) SSIM loss map."""
    assert x.shape == y.shape and x.ndim == 4
    N, C, H, W = x.shape
    assert H >= 2 and W >= 2, "ReflectionPad2d(1) needs H, W >= 2"
    P = N * C

    vmem_limit = _vmem_limit_bytes()
    B = _pick_planes_per_step(P, H, W, x.dtype.itemsize, vmem_limit)

    # Free, metadata-only reshapes: planes become the leading block dim.
    x3 = x.reshape(P, H, W)
    y3 = y.reshape(P, H, W)

    # Note: the block's last two dims equal the full (H, W) extents, so the
    # (8,128) divisibility rule is satisfied for any H, W.  For W not a
    # multiple of 128 the output stores are masked (vst.msk) — acceptable for
    # the small pyramid scales; the main monodepth scale (W=640) is
    # lane-dense.
    out = pl.pallas_call(
        _ssim_kernel,
        out_shape=jax.ShapeDtypeStruct((P, H, W), x.dtype),
        grid_spec=pltpu.PrefetchScalarGridSpec(
            num_scalar_prefetch=0,
            grid=(P // B,),
            in_specs=[
                pl.BlockSpec((B, H, W), lambda i: (i, 0, 0)),
                pl.BlockSpec((B, H, W), lambda i: (i, 0, 0)),
            ],
            out_specs=pl.BlockSpec((B, H, W), lambda i: (i, 0, 0)),
        ),
        compiler_params=pltpu.CompilerParams(
            dimension_semantics=("parallel",),
            vmem_limit_bytes=vmem_limit,
        ),
    )(x3, y3)

    return out.reshape(N, C, H, W)


def _ssim_ref(x, y):
    # Pure-JAX reference mirroring the PyTorch module exactly.
    xp = jnp.pad(x, ((0, 0), (0, 0), (1, 1), (1, 1)), mode="reflect")
    yp = jnp.pad(y, ((0, 0), (0, 0), (1, 1), (1, 1)), mode="reflect")

    def pool(p):
        N, C, Hp, Wp = p.shape
        H, W = Hp - 2, Wp - 2
        acc = jnp.zeros((N, C, H, W), p.dtype)
        for di in range(3):
            for dj in range(3):
                acc = acc + p[:, :, di:di + H, dj:dj + W]
        return acc / 9.0

    mu_x, mu_y = pool(xp), pool(yp)
    sigma_x = pool(xp * xp) - mu_x ** 2
    sigma_y = pool(yp * yp) - mu_y ** 2
    sigma_xy = pool(xp * yp) - mu_x * mu_y
    n = (2 * mu_x * mu_y + C1) * (2 * sigma_xy + C2)
    d = (mu_x ** 2 + mu_y ** 2 + C1) * (sigma_x + sigma_y + C2)
    return jnp.clip((1 - n / d) / 2, 0.0, 1.0)


if __name__ == "__main__":
    key = jax.random.PRNGKey(0)
    kx, ky = jax.random.split(key)
    N, C, H, W = 2, 4, 16, 16
    x = jax.random.uniform(kx, (N, C, H, W), dtype=jnp.float32)
    y = jax.random.uniform(ky, (N, C, H, W), dtype=jnp.float32)

    out = jax.jit(ssim_pallas)(x, y)
    jax.block_until_ready(out)

    ref = _ssim_ref(x, y)
    assert out.shape == (N, C, H, W)
    err = float(jnp.max(jnp.abs(out - ref)))
    # Error budget: approx reciprocal + 1 Newton step, the MXU's f32 pass
    # decomposition, and the different (separable, 81-scaled) summation
    # order — all comfortably inside 2e-4 for inputs in [0, 1].
    assert jnp.allclose(out, ref, atol=2e-4, rtol=2e-4), err

    print("KERNEL_OK")
</pallas_src>

<mosaic_0001>
module attributes {stable_mosaic.version = 11 : i64} {
  func.func @_ssim_kernel(%arg0: i32, %arg1: memref<2x16x16xf32, #tpu.memory_space<vmem>>, %arg2: memref<2x16x16xf32, #tpu.memory_space<vmem>>, %arg3: memref<2x16x16xf32, #tpu.memory_space<vmem>>) attributes {dimension_semantics = [#tpu.dimension_semantics<parallel>], iteration_bounds = array<i64: 4>, scalar_prefetch = 0 : i64, scratch_operands = 0 : i64, tpu.core_type = #tpu.core_type<tc>, window_params = [{transform_indices = @transform_0, window_bounds = array<i64: 2, 16, 16>}, {transform_indices = @transform_1, window_bounds = array<i64: 2, 16, 16>}, {transform_indices = @transform_2, window_bounds = array<i64: 2, 16, 16>}]} {
    %c0 = arith.constant 0 : index
    %c0_0 = arith.constant 0 : index
    %c0_1 = arith.constant 0 : index
    %0 = vector.load %arg1[%c0, %c0_0, %c0_1] : memref<2x16x16xf32, #tpu.memory_space<vmem>>, vector<2x16x16xf32>
    %c0_2 = arith.constant 0 : index
    %c0_3 = arith.constant 0 : index
    %c0_4 = arith.constant 0 : index
    %1 = vector.load %arg2[%c0_2, %c0_3, %c0_4] : memref<2x16x16xf32, #tpu.memory_space<vmem>>, vector<2x16x16xf32>
    %2 = tpu.iota {dimensions = array<i32: 2>} : vector<2x16x16xi32>
    %c0_i32 = arith.constant 0 : i32
    %3 = vector.broadcast %c0_i32 : i32 to vector<2x16x16xi32>
    %4 = arith.cmpi eq, %2, %3 : vector<2x16x16xi32>
    %c15_i32 = arith.constant 15 : i32
    %5 = vector.broadcast %c15_i32 : i32 to vector<2x16x16xi32>
    %6 = arith.cmpi eq, %2, %5 : vector<2x16x16xi32>
    %7 = tpu.iota {dimensions = array<i32: 0>} : vector<16x16xi32>
    %8 = tpu.iota {dimensions = array<i32: 1>} : vector<16x16xi32>
    %9 = arith.subi %7, %8 : vector<16x16xi32>
    %c-1_i32 = arith.constant -1 : i32
    %10 = vector.broadcast %c-1_i32 : i32 to vector<16x16xi32>
    %11 = arith.cmpi sge, %9, %10 : vector<16x16xi32>
    %c1_i32 = arith.constant 1 : i32
    %12 = vector.broadcast %c1_i32 : i32 to vector<16x16xi32>
    %13 = arith.cmpi sle, %9, %12 : vector<16x16xi32>
    %14 = arith.andi %11, %13 : vector<16x16xi1>
    %cst = arith.constant 1.000000e+00 : f32
    %cst_5 = arith.constant 0.000000e+00 : f32
    %15 = vector.broadcast %cst : f32 to vector<16x16xf32>
    %16 = vector.broadcast %cst_5 : f32 to vector<16x16xf32>
    %17 = arith.select %14, %15, %16 : vector<16x16xi1>, vector<16x16xf32>
    %c0_i32_6 = arith.constant 0 : i32
    %18 = vector.broadcast %c0_i32_6 : i32 to vector<16x16xi32>
    %19 = arith.cmpi eq, %7, %18 : vector<16x16xi32>
    %c1_i32_7 = arith.constant 1 : i32
    %20 = vector.broadcast %c1_i32_7 : i32 to vector<16x16xi32>
    %21 = arith.cmpi eq, %8, %20 : vector<16x16xi32>
    %22 = arith.andi %19, %21 : vector<16x16xi1>
    %c15_i32_8 = arith.constant 15 : i32
    %23 = vector.broadcast %c15_i32_8 : i32 to vector<16x16xi32>
    %24 = arith.cmpi eq, %7, %23 : vector<16x16xi32>
    %c14_i32 = arith.constant 14 : i32
    %25 = vector.broadcast %c14_i32 : i32 to vector<16x16xi32>
    %26 = arith.cmpi eq, %8, %25 : vector<16x16xi32>
    %27 = arith.andi %24, %26 : vector<16x16xi1>
    %28 = arith.ori %22, %27 : vector<16x16xi1>
    %cst_9 = arith.constant 1.000000e+00 : f32
    %cst_10 = arith.constant 0.000000e+00 : f32
    %29 = vector.broadcast %cst_9 : f32 to vector<16x16xf32>
    %30 = vector.broadcast %cst_10 : f32 to vector<16x16xf32>
    %31 = arith.select %28, %29, %30 : vector<16x16xi1>, vector<16x16xf32>
    %32 = arith.addf %17, %31 : vector<16x16xf32>
    %33 = vector.shape_cast %32 : vector<16x16xf32> to vector<1x16x16xf32>
    %34 = vector.broadcast %33 : vector<1x16x16xf32> to vector<2x16x16xf32>
    %c1_i32_11 = arith.constant 1 : i32
    %35 = tpu.dynamic_rotate %0 by %c1_i32_11 dim 2 : vector<2x16x16xf32>, i32 -> vector<2x16x16xf32>
    %c15_i32_12 = arith.constant 15 : i32
    %36 = tpu.dynamic_rotate %0 by %c15_i32_12 dim 2 : vector<2x16x16xf32>, i32 -> vector<2x16x16xf32>
    %37 = arith.select %4, %36, %35 : vector<2x16x16xi1>, vector<2x16x16xf32>
    %38 = arith.addf %37, %0 : vector<2x16x16xf32>
    %39 = arith.select %6, %35, %36 : vector<2x16x16xi1>, vector<2x16x16xf32>
    %40 = arith.addf %38, %39 : vector<2x16x16xf32>
    "tpu.trace_start"() <{level = 10 : i32, message = "bhk,bkw->bhw"}> : () -> ()
    %cst_13 = arith.constant dense<0.000000e+00> : vector<2x16x16xf32>
    %41 = tpu.matmul %34, %40, %cst_13 {dimension_numbers = #tpu.dot_dimension_numbers<[2], [1], [1], [2], [0, 0, 0, 1, 1, 2], [0], [0]>} : vector<2x16x16xf32>, vector<2x16x16xf32>, vector<2x16x16xf32> -> vector<2x16x16xf32>
    %c1_i32_14 = arith.constant 1 : i32
    "tpu.trace_stop"() : () -> ()
    %42 = tpu.dynamic_rotate %1 by %c1_i32_14 dim 2 : vector<2x16x16xf32>, i32 -> vector<2x16x16xf32>
    %c15_i32_15 = arith.constant 15 : i32
    %43 = tpu.dynamic_rotate %1 by %c15_i32_15 dim 2 : vector<2x16x16xf32>, i32 -> vector<2x16x16xf32>
    %44 = arith.select %4, %43, %42 : vector<2x16x16xi1>, vector<2x16x16xf32>
    %45 = arith.addf %44, %1 : vector<2x16x16xf32>
    %46 = arith.select %6, %42, %43 : vector<2x16x16xi1>, vector<2x16x16xf32>
    %47 = arith.addf %45, %46 : vector<2x16x16xf32>
    "tpu.trace_start"() <{level = 10 : i32, message = "bhk,bkw->bhw"}> : () -> ()
    %cst_16 = arith.constant dense<0.000000e+00> : vector<2x16x16xf32>
    %48 = tpu.matmul %34, %47, %cst_16 {dimension_numbers = #tpu.dot_dimension_numbers<[2], [1], [1], [2], [0, 0, 0, 1, 1, 2], [0], [0]>} : vector<2x16x16xf32>, vector<2x16x16xf32>, vector<2x16x16xf32> -> vector<2x16x16xf32>
    "tpu.trace_stop"() : () -> ()
    %49 = arith.mulf %0, %0 : vector<2x16x16xf32>
    %c1_i32_17 = arith.constant 1 : i32
    %50 = tpu.dynamic_rotate %49 by %c1_i32_17 dim 2 : vector<2x16x16xf32>, i32 -> vector<2x16x16xf32>
    %c15_i32_18 = arith.constant 15 : i32
    %51 = tpu.dynamic_rotate %49 by %c15_i32_18 dim 2 : vector<2x16x16xf32>, i32 -> vector<2x16x16xf32>
    %52 = arith.select %4, %51, %50 : vector<2x16x16xi1>, vector<2x16x16xf32>
    %53 = arith.addf %52, %49 : vector<2x16x16xf32>
    %54 = arith.select %6, %50, %51 : vector<2x16x16xi1>, vector<2x16x16xf32>
    %55 = arith.addf %53, %54 : vector<2x16x16xf32>
    "tpu.trace_start"() <{level = 10 : i32, message = "bhk,bkw->bhw"}> : () -> ()
    %cst_19 = arith.constant dense<0.000000e+00> : vector<2x16x16xf32>
    %56 = tpu.matmul %34, %55, %cst_19 {dimension_numbers = #tpu.dot_dimension_numbers<[2], [1], [1], [2], [0, 0, 0, 1, 1, 2], [0], [0]>} : vector<2x16x16xf32>, vector<2x16x16xf32>, vector<2x16x16xf32> -> vector<2x16x16xf32>
    "tpu.trace_stop"() : () -> ()
    %57 = arith.mulf %1, %1 : vector<2x16x16xf32>
    %c1_i32_20 = arith.constant 1 : i32
    %58 = tpu.dynamic_rotate %57 by %c1_i32_20 dim 2 : vector<2x16x16xf32>, i32 -> vector<2x16x16xf32>
    %c15_i32_21 = arith.constant 15 : i32
    %59 = tpu.dynamic_rotate %57 by %c15_i32_21 dim 2 : vector<2x16x16xf32>, i32 -> vector<2x16x16xf32>
    %60 = arith.select %4, %59, %58 : vector<2x16x16xi1>, vector<2x16x16xf32>
    %61 = arith.addf %60, %57 : vector<2x16x16xf32>
    %62 = arith.select %6, %58, %59 : vector<2x16x16xi1>, vector<2x16x16xf32>
    %63 = arith.addf %61, %62 : vector<2x16x16xf32>
    "tpu.trace_start"() <{level = 10 : i32, message = "bhk,bkw->bhw"}> : () -> ()
    %cst_22 = arith.constant dense<0.000000e+00> : vector<2x16x16xf32>
    %64 = tpu.matmul %34, %63, %cst_22 {dimension_numbers = #tpu.dot_dimension_numbers<[2], [1], [1], [2], [0, 0, 0, 1, 1, 2], [0], [0]>} : vector<2x16x16xf32>, vector<2x16x16xf32>, vector<2x16x16xf32> -> vector<2x16x16xf32>
    "tpu.trace_stop"() : () -> ()
    %65 = arith.mulf %0, %1 : vector<2x16x16xf32>
    %c1_i32_23 = arith.constant 1 : i32
    %66 = tpu.dynamic_rotate %65 by %c1_i32_23 dim 2 : vector<2x16x16xf32>, i32 -> vector<2x16x16xf32>
    %c15_i32_24 = arith.constant 15 : i32
    %67 = tpu.dynamic_rotate %65 by %c15_i32_24 dim 2 : vector<2x16x16xf32>, i32 -> vector<2x16x16xf32>
    %68 = arith.select %4, %67, %66 : vector<2x16x16xi1>, vector<2x16x16xf32>
    %69 = arith.addf %68, %65 : vector<2x16x16xf32>
    %70 = arith.select %6, %66, %67 : vector<2x16x16xi1>, vector<2x16x16xf32>
    %71 = arith.addf %69, %70 : vector<2x16x16xf32>
    "tpu.trace_start"() <{level = 10 : i32, message = "bhk,bkw->bhw"}> : () -> ()
    %cst_25 = arith.constant dense<0.000000e+00> : vector<2x16x16xf32>
    %72 = tpu.matmul %34, %71, %cst_25 {dimension_numbers = #tpu.dot_dimension_numbers<[2], [1], [1], [2], [0, 0, 0, 1, 1, 2], [0], [0]>} : vector<2x16x16xf32>, vector<2x16x16xf32>, vector<2x16x16xf32> -> vector<2x16x16xf32>
    "tpu.trace_stop"() : () -> ()
    %73 = arith.mulf %41, %48 : vector<2x16x16xf32>
    %74 = arith.addf %73, %73 : vector<2x16x16xf32>
    %cst_26 = arith.constant 8.100000e-03 : f32
    %75 = vector.broadcast %cst_26 : f32 to vector<2x16x16xf32>
    %76 = arith.addf %74, %75 : vector<2x16x16xf32>
    %cst_27 = arith.constant 1.800000e+01 : f32
    %77 = vector.broadcast %cst_27 : f32 to vector<2x16x16xf32>
    %78 = arith.mulf %77, %72 : vector<2x16x16xf32>
    %79 = arith.subf %78, %74 : vector<2x16x16xf32>
    %cst_28 = arith.constant 7.290000e-02 : f32
    %80 = vector.broadcast %cst_28 : f32 to vector<2x16x16xf32>
    %81 = arith.addf %79, %80 : vector<2x16x16xf32>
    %82 = arith.mulf %76, %81 : vector<2x16x16xf32>
    %83 = arith.mulf %41, %41 : vector<2x16x16xf32>
    %84 = arith.mulf %48, %48 : vector<2x16x16xf32>
    %85 = arith.addf %83, %84 : vector<2x16x16xf32>
    %cst_29 = arith.constant 8.100000e-03 : f32
    %86 = vector.broadcast %cst_29 : f32 to vector<2x16x16xf32>
    %87 = arith.addf %85, %86 : vector<2x16x16xf32>
    %88 = arith.addf %56, %64 : vector<2x16x16xf32>
    %cst_30 = arith.constant 9.000000e+00 : f32
    %89 = vector.broadcast %cst_30 : f32 to vector<2x16x16xf32>
    %90 = arith.mulf %89, %88 : vector<2x16x16xf32>
    %91 = arith.subf %90, %85 : vector<2x16x16xf32>
    %cst_31 = arith.constant 7.290000e-02 : f32
    %92 = vector.broadcast %cst_31 : f32 to vector<2x16x16xf32>
    %93 = arith.addf %91, %92 : vector<2x16x16xf32>
    %94 = arith.mulf %87, %93 : vector<2x16x16xf32>
    %95 = tpu.reciprocal %94 {approx = true} : vector<2x16x16xf32> -> vector<2x16x16xf32>
    %96 = arith.mulf %94, %95 : vector<2x16x16xf32>
    %cst_32 = arith.constant 2.000000e+00 : f32
    %97 = vector.broadcast %cst_32 : f32 to vector<2x16x16xf32>
    %98 = arith.subf %97, %96 : vector<2x16x16xf32>
    %99 = arith.mulf %95, %98 : vector<2x16x16xf32>
    %100 = arith.mulf %82, %99 : vector<2x16x16xf32>
    %cst_33 = arith.constant 1.000000e+00 : f32
    %101 = vector.broadcast %cst_33 : f32 to vector<2x16x16xf32>
    %102 = arith.subf %101, %100 : vector<2x16x16xf32>
    %cst_34 = arith.constant 5.000000e-01 : f32
    %103 = vector.broadcast %cst_34 : f32 to vector<2x16x16xf32>
    %104 = arith.mulf %102, %103 : vector<2x16x16xf32>
    %cst_35 = arith.constant 0.000000e+00 : f32
    %cst_36 = arith.constant 1.000000e+00 : f32
    %105 = vector.broadcast %cst_35 : f32 to vector<2x16x16xf32>
    %106 = arith.maximumf %105, %104 : vector<2x16x16xf32>
    %107 = vector.broadcast %cst_36 : f32 to vector<2x16x16xf32>
    %108 = arith.minimumf %107, %106 : vector<2x16x16xf32>
    %c0_37 = arith.constant 0 : index
    %c0_38 = arith.constant 0 : index
    %c0_39 = arith.constant 0 : index
    %109 = vector.load %arg3[%c0_37, %c0_38, %c0_39] : memref<2x16x16xf32, #tpu.memory_space<vmem>>, vector<2x16x16xf32>
    tpu.vector_store %arg3[%c0_37, %c0_38, %c0_39], %108 {strides = array<i32>} : memref<2x16x16xf32, #tpu.memory_space<vmem>>, vector<2x16x16xf32>,
    return
  }
  func.func @transform_0(%arg0: i32) -> (i32, i32, i32) {
    %c0_i32 = arith.constant 0 : i32
    %c0_i32_0 = arith.constant 0 : i32
    %c0_i32_1 = arith.constant 0 : i32
    return %arg0, %c0_i32, %c0_i32_0 : i32, i32, i32
  }
  func.func @transform_1(%arg0: i32) -> (i32, i32, i32) {
    %c0_i32 = arith.constant 0 : i32
    %c0_i32_0 = arith.constant 0 : i32
    %c0_i32_1 = arith.constant 0 : i32
    return %arg0, %c0_i32, %c0_i32_0 : i32, i32, i32
  }
  func.func @transform_2(%arg0: i32) -> (i32, i32, i32) {
    %c0_i32 = arith.constant 0 : i32
    %c0_i32_0 = arith.constant 0 : i32
    %c0_i32_1 = arith.constant 0 : i32
    return %arg0, %c0_i32, %c0_i32_0 : i32, i32, i32
  }
}

</mosaic_0001>

<llo_original>
// kernel: ssim_pallas.1
$region0: #{ssim_pallas.1}
  #allocation0 [shape = 'u32[]', space=smem, size = 0x4, offset = 0x4, fixed_abs, tag = 'smem constant byte address 0x4 - core index']
  #allocation1 [shape = 'u32[144,128]{1,0:T(1,128)}', space=vmem, size = 0x12000, scoped, tag = 'internal scratch']
  %s0 = inlined_call_operand.hbm [shape: f32[8,16,16], index: 0, kind: input, shape index: {}]
  %s1 = inlined_call_operand.hbm [shape: f32[8,16,16], index: 1, kind: input, shape index: {}]
  %s2 = inlined_call_operand.hbm [shape: f32[8,16,16], index: 2, kind: output, shape index: {}]
  %s3 = sld [smem:[#allocation0]]
  $region49: #{ssim_pallas.1} parent=0
    _
  %s5 = ssub.s32 1, %s3
  %s6 = scalar_select 0, %s5, %s3
  $region1: #{ssim_pallas.1} parent=0
    #allocation2 [shape = 'u8[32768]{0}', space=vmem, size = 0x8000, scoped, tag = 'input window, operand 0']
    #allocation3 [shape = 's32[2]{0}', space=sflag, size = 0x8, scoped, tag = 'scoped memory for ssim_pallas.1']
    #allocation4 [shape = 's32[2]{0}', space=sflag, size = 0x8, scoped, tag = 'scoped memory for ssim_pallas.1']
    #allocation5 [shape = 'u8[32768]{0}', space=vmem, size = 0x8000, scoped, tag = 'input window, operand 1']
    #allocation6 [shape = 's32[2]{0}', space=sflag, size = 0x8, scoped, tag = 'scoped memory for ssim_pallas.1']
    #allocation7 [shape = 'u8[32768]{0}', space=vmem, size = 0x8000, scoped, tag = 'output window, operand 0']
    %7 = vsyncpa [#allocation3], 0
    %s8 = scalar_lea.sflag [#allocation3], 1
    %9 = vsyncpa %s8, 0
    %10 = vsyncpa [#allocation6], 0
    %s11 = scalar_lea.sflag [#allocation6], 1
    %12 = vsyncpa %s11, 0
    %13 = vsyncpa [#allocation4], 0
    %s14 = scalar_lea.sflag [#allocation4], 1
    %15 = vsyncpa %s14, 0
    loop: start=0, step=1, limit=6
    $region2: #{ssim_pallas.1} parent=1 // loop_pre_header
      _
    $region3: #{ssim_pallas.1} parent=1 // loop_header
      %s17 = sphi 0, %s21
      %p18 = scmp.ge.s32.totalorder %s17, 6
      %s27 = sphi 0, %s29
      %s30 = sphi 0, %s27
      %s31 = sphi 0, %s30
      %s47 = sphi 0, %s31
      %s53 = sphi 0, %s55
      %s56 = sphi 0, %s53
      %s57 = sphi 0, %s56
      %s73 = sphi 0, %s57
      %s79 = sphi 0, %s81
      %s82 = sphi 0, %s79
      %s83 = sphi 0, %s82
      %s99 = sphi 0, %s83
    $region4: #{ssim_pallas.1} parent=1 // loop_header_branch
      %20 = sbr.rel (%p18) target = $region8
    $region5: #{ssim_pallas.1} parent=1 // loop_body
      %s22 = ssub.s32 %s17, 1
      %s23 = ssub.s32 %s17, 2
      %s24 = sadd.s32 %s17, 1
      %s25 = ssub.s32 %s17, %s24
      %p26 = scmp.eq.s32.totalorder %s25, 0
      %s28 = sadd.s32 %s27, 1
      %s29 = scalar_select %p26, %s27, %s28
      %p32 = pneg %p26
      %p33 = scmp.eq.s32.totalorder %s17, 3
      %p34 = por %p32, %p33
      %p35 = scmp.ne.s32.totalorder %s27, %s30
      %p36 = scmp.eq.s32.totalorder %s17, 0
      %p37 = por %p35, %p36
      %p38 = scmp.ne.s32.totalorder %s27, %s30
      %p39 = scmp.eq.s32.totalorder %s22, 3
      %p40 = por %p38, %p39
      %p41 = scmp.ne.s32.totalorder %s30, %s31
      %p42 = scmp.eq.s32.totalorder %s22, 0
      %p43 = por %p41, %p42
      %p44 = scmp.ne.s32.totalorder %s30, %s31
      %p45 = scmp.eq.s32.totalorder %s23, 3
      %p46 = por %p44, %p45
      %p48 = scmp.ne.s32.totalorder %s31, %s47
      %p49 = scmp.eq.s32.totalorder %s23, 0
      %p50 = por %p48, %p49
      %s51 = ssub.s32 %s17, %s24
      %p52 = scmp.eq.s32.totalorder %s51, 0
      %s54 = sadd.s32 %s53, 1
      %s55 = scalar_select %p52, %s53, %s54
      %p58 = pneg %p52
      %p59 = scmp.eq.s32.totalorder %s17, 3
      %p60 = por %p58, %p59
      %p61 = scmp.ne.s32.totalorder %s53, %s56
      %p62 = scmp.eq.s32.totalorder %s17, 0
      %p63 = por %p61, %p62
      %p64 = scmp.ne.s32.totalorder %s53, %s56
      %p65 = scmp.eq.s32.totalorder %s22, 3
      %p66 = por %p64, %p65
      %p67 = scmp.ne.s32.totalorder %s56, %s57
      %p68 = scmp.eq.s32.totalorder %s22, 0
      %p69 = por %p67, %p68
      %p70 = scmp.ne.s32.totalorder %s56, %s57
      %p71 = scmp.eq.s32.totalorder %s23, 3
      %p72 = por %p70, %p71
      %p74 = scmp.ne.s32.totalorder %s57, %s73
      %p75 = scmp.eq.s32.totalorder %s23, 0
      %p76 = por %p74, %p75
      %s77 = ssub.s32 %s17, %s24
      %p78 = scmp.eq.s32.totalorder %s77, 0
      %s80 = sadd.s32 %s79, 1
      %s81 = scalar_select %p78, %s79, %s80
      %p84 = pneg %p78
      %p85 = scmp.eq.s32.totalorder %s17, 3
      %p86 = por %p84, %p85
      %p87 = scmp.ne.s32.totalorder %s79, %s82
      %p88 = scmp.eq.s32.totalorder %s17, 0
      %p89 = por %p87, %p88
      %p90 = scmp.ne.s32.totalorder %s79, %s82
      %p91 = scmp.eq.s32.totalorder %s22, 3
      %p92 = por %p90, %p91
      %p93 = scmp.ne.s32.totalorder %s82, %s83
      %p94 = scmp.eq.s32.totalorder %s22, 0
      %p95 = por %p93, %p94
      %p96 = scmp.ne.s32.totalorder %s82, %s83
      %p97 = scmp.eq.s32.totalorder %s23, 3
      %p98 = por %p96, %p97
      %p100 = scmp.ne.s32.totalorder %s83, %s99
      %p101 = scmp.eq.s32.totalorder %s23, 0
      %p102 = por %p100, %p101
      %p103 = scmp.le.s32.totalorder 1, %s17
      %p104 = scmp.lt.s32.totalorder %s17, 5
      %p105 = pnand %p103, %p104
      %p106 = pneg %p105
      // Predicated region
      $region9: #{ssim_pallas.1} parent=5 // pred_check
        _
      $region10: #{ssim_pallas.1} parent=5 // pred_check_branch
        %108 = sbr.rel (%p105) target = $region12
      $region11: #{ssim_pallas.1} parent=5 // pred_region
        %s109 = ssub.s32 %s17, 1
      $region12: #{ssim_pallas.1} parent=5 // pred_fallthru
        _
      %p110 = scmp.lt.s32.totalorder %s17, 4
      // Predicated region
      $region13: #{ssim_pallas.1} parent=5 // pred_check
        %p111 = pneg %p110
      $region14: #{ssim_pallas.1} parent=5 // pred_check_branch
        %113 = sbr.rel (%p111) target = $region16
      $region15: #{ssim_pallas.1} parent=5 // pred_region
        // Predicated region
        $region17: #{ssim_pallas.1} parent=15 // pred_check
          %p114 = pneg %p37
        $region18: #{ssim_pallas.1} parent=15 // pred_check_branch
          %116 = sbr.rel (%p114) target = $region20
        $region19: #{ssim_pallas.1} parent=15 // pred_region
          %s117 = sand.u32 %s27, 1
          %s118 = scalar_lea.sflag [#allocation3], %s117
          %s119 = sand.u32 %s27, 1
          %s120 = smul.addr %s119, 32
          %s121 = scalar_lea.vmem [#allocation2], %s120
          %s122 = smul.u32 2, %s17
          %s124 = ssub.s32 512, 512
          %125 = vsyncadd %s118, %s124
          %s126 = smul.addr %s122, 2
          %s127 = smul.addr %s126, 128
          %s128 = scalar_lea.hbm %s0, %s127
          %s129 = sshll.u32 %s121, 4
          %s130 = int_to_ptr.vmem [resolvable:$true] %s129
          %135 = dma.hbm_to_vmem [thread:$0]  %s128, 512, %s130, %s118, 128, 128, 8
        $region20: #{ssim_pallas.1} parent=15 // pred_fallthru
          _
        // Predicated region
        $region21: #{ssim_pallas.1} parent=15 // pred_check
          %p136 = pneg %p63
        $region22: #{ssim_pallas.1} parent=15 // pred_check_branch
          %138 = sbr.rel (%p136) target = $region24
        $region23: #{ssim_pallas.1} parent=15 // pred_region
          %s139 = sand.u32 %s53, 1
          %s140 = scalar_lea.sflag [#allocation6], %s139
          %s141 = sand.u32 %s53, 1
          %s142 = smul.addr %s141, 32
          %s143 = scalar_lea.vmem [#allocation5], %s142
          %s144 = smul.u32 2, %s17
          %s146 = ssub.s32 512, 512
          %147 = vsyncadd %s140, %s146
          %s148 = smul.addr %s144, 2
          %s149 = smul.addr %s148, 128
          %s150 = scalar_lea.hbm %s1, %s149
          %s151 = sshll.u32 %s143, 4
          %s152 = int_to_ptr.vmem [resolvable:$true] %s151
          %157 = dma.hbm_to_vmem [thread:$0]  %s150, 512, %s152, %s140, 128, 128, 8
        $region24: #{ssim_pallas.1} parent=15 // pred_fallthru
          _
      $region16: #{ssim_pallas.1} parent=5 // pred_fallthru
        _
      %p158 = scmp.le.s32.totalorder 1, %s17
      %p159 = scmp.lt.s32.totalorder %s17, 5
      %p160 = pnand %p158, %p159
      %p161 = pneg %p160
      // Predicated region
      $region25: #{ssim_pallas.1} parent=5 // pred_check
        _
      $region26: #{ssim_pallas.1} parent=5 // pred_check_branch
        %163 = sbr.rel (%p160) target = $region28
      $region27: #{ssim_pallas.1} parent=5 // pred_region
        %s164 = ssub.s32 %s17, 1
        %s165 = sand.u32 %s30, 1
        %s166 = scalar_lea.sflag [#allocation3], %s165
        %s167 = sand.u32 %s30, 1
        %s168 = smul.addr %s167, 32
        %s169 = scalar_lea.vmem [#allocation2], %s168
        // Predicated region
        $region29: #{ssim_pallas.1} parent=27 // pred_check
          %p170 = pneg %p43
        $region30: #{ssim_pallas.1} parent=27 // pred_check_branch
          %172 = sbr.rel (%p170) target = $region32
        $region31: #{ssim_pallas.1} parent=27 // pred_region
          %173 = dma.done %s166, 512
        $region32: #{ssim_pallas.1} parent=27 // pred_fallthru
          _
        %s174 = sand.u32 %s56, 1
        %s175 = scalar_lea.sflag [#allocation6], %s174
        %s176 = sand.u32 %s56, 1
        %s177 = smul.addr %s176, 32
        %s178 = scalar_lea.vmem [#allocation5], %s177
        // Predicated region
        $region33: #{ssim_pallas.1} parent=27 // pred_check
          %p179 = pneg %p69
        $region34: #{ssim_pallas.1} parent=27 // pred_check_branch
          %181 = sbr.rel (%p179) target = $region36
        $region35: #{ssim_pallas.1} parent=27 // pred_region
          %182 = dma.done %s175, 512
        $region36: #{ssim_pallas.1} parent=27 // pred_fallthru
          _
        %s183 = sand.u32 %s30, 1
        %s184 = scalar_lea.sflag [#allocation3], %s183
        %s185 = sand.u32 %s30, 1
        %s186 = smul.addr %s185, 32
        %s187 = scalar_lea.vmem [#allocation2], %s186
        %p188 = pneg %p43
        %p189 = pneg %p40
        %s190 = sand.u32 %s56, 1
        %s191 = scalar_lea.sflag [#allocation6], %s190
        %s192 = sand.u32 %s56, 1
        %s193 = smul.addr %s192, 32
        %s194 = scalar_lea.vmem [#allocation5], %s193
        %p195 = pneg %p69
        %p196 = pneg %p66
        %p197 = pneg %p95
        %p198 = pneg %p92
        %s199 = sand.u32 %s82, 1
        %s200 = scalar_lea.sflag [#allocation4], %s199
        %s201 = sand.u32 %s82, 1
        %s202 = smul.addr %s201, 32
        %s203 = scalar_lea.vmem [#allocation7], %s202
        %s204 = smul.u32 2, %s22
        %s205 = smul.u32 2, %s22
        %s206 = smul.u32 2, %s22
        %v207 = vld [vmem:[%s169] sm:$0xff]
        %v208 = vld [vmem:[%s169 + $0x8] sm:$0xff]
        %v209 = vld [vmem:[%s169 + $0x10] sm:$0xff]
        %v210 = vld [vmem:[%s169 + $0x18] sm:$0xff]
        %v211 = vld [vmem:[%s178] sm:$0xff]
        %v212 = vld [vmem:[%s178 + $0x8] sm:$0xff]
        %v213 = vld [vmem:[%s178 + $0x10] sm:$0xff]
        %v214 = vld [vmem:[%s178 + $0x18] sm:$0xff]
        %v215 = vlaneseq
        %v216 = vand.u32 %v215, 127
        %vm217 = vcmp.eq.s32.totalorder %v216, 0
        %vm218 = vcmp.eq.s32.totalorder %v216, 15
        %v219 = vlaneseq
        %v220 = vshrl.u32 %v219, 7
        %v221 = vadd.s32 %v220, 8
        %v222 = vsub.s32 %v220, %v216
        %v223 = vsub.s32 %v221, %v216
        %vm224 = vcmp.ge.s32.totalorder %v222, 4294967295
        %vm225 = vcmp.ge.s32.totalorder %v223, 4294967295
        %vm226 = vcmp.le.s32.totalorder %v222, 1
        %vm227 = vcmp.le.s32.totalorder %v223, 1
        %vm228 = vmand %vm224, %vm226
        %vm229 = vmand %vm225, %vm227
        %v230 = vsel %vm228, 1.0, 0.0
        %v231 = vsel %vm229, 1.0, 0.0
        %vm232 = vcmp.eq.s32.totalorder %v220, 0
        %vm233 = vcmp.eq.s32.totalorder %v221, 0
        %vm234 = vcmp.eq.s32.totalorder %v216, 1
        %vm235 = vmand %vm232, %vm234
        %vm236 = vmand %vm233, %vm234
        %vm237 = vcmp.eq.s32.totalorder %v220, 15
        %vm238 = vcmp.eq.s32.totalorder %v221, 15
        %vm239 = vcmp.eq.s32.totalorder %v216, 14
        %vm240 = vmand %vm237, %vm239
        %vm241 = vmand %vm238, %vm239
        %vm242 = vmor %vm235, %vm240
        %vm243 = vmor %vm236, %vm241
        %v244 = vsel %vm242, 1.0, 0.0
        %v245 = vsel %vm243, 1.0, 0.0
        %v246 = vadd.f32 %v230, %v244
        %v247 = vadd.f32 %v231, %v245
        %vm248 = vcmask 1047680
        %249 = vrot.lane.b32.xlu0 %v207, 16
        %v250 = vpop.permute.xlu0 %249
        %v251 = vsel %vm248, %v250, %v207
        %252 = vrot.lane.b32.xlu0 %v208, 16
        %v253 = vpop.permute.xlu0 %252
        %v254 = vsel %vm248, %v253, %v208
        %255 = vrot.lane.b32.xlu0 %v209, 16
        %v256 = vpop.permute.xlu0 %255
        %v257 = vsel %vm248, %v256, %v209
        %258 = vrot.lane.b32.xlu0 %v210, 16
        %v259 = vpop.permute.xlu0 %258
        %v260 = vsel %vm248, %v259, %v210
        %261 = vrot.lane.b32.xlu0 %v251, 16
        %v262 = vpop.permute.xlu0 %261
        %263 = vrot.lane.b32.xlu0 %v254, 16
        %v264 = vpop.permute.xlu0 %263
        %265 = vrot.lane.b32.xlu0 %v257, 16
        %v266 = vpop.permute.xlu0 %265
        %267 = vrot.lane.b32.xlu0 %v260, 16
        %v268 = vpop.permute.xlu0 %267
        %v269 = vsel %vm248, %v262, %v207
        %v270 = vsel %vm248, %v264, %v208
        %v271 = vsel %vm248, %v266, %v209
        %v272 = vsel %vm248, %v268, %v210
        %277 = vrot.lane.b32.xlu0 %v269, 127
        %v278 = vpop.permute.xlu0 %277
        %279 = vrot.lane.b32.xlu0 %v270, 127
        %v280 = vpop.permute.xlu0 %279
        %281 = vrot.lane.b32.xlu0 %v271, 127
        %v282 = vpop.permute.xlu0 %281
        %283 = vrot.lane.b32.xlu0 %v272, 127
        %v284 = vpop.permute.xlu0 %283
        %289 = vrot.lane.b32.xlu0 %v269, 113
        %v290 = vpop.permute.xlu0 %289
        %291 = vrot.lane.b32.xlu0 %v270, 113
        %v292 = vpop.permute.xlu0 %291
        %293 = vrot.lane.b32.xlu0 %v271, 113
        %v294 = vpop.permute.xlu0 %293
        %295 = vrot.lane.b32.xlu0 %v272, 113
        %v296 = vpop.permute.xlu0 %295
        %v301 = vsel %vm217, %v278, %v290
        %v302 = vsel %vm217, %v280, %v292
        %v303 = vsel %vm217, %v282, %v294
        %v304 = vsel %vm217, %v284, %v296
        %v305 = vadd.f32 %v301, %v207
        %v306 = vadd.f32 %v302, %v208
        %v307 = vadd.f32 %v303, %v209
        %v308 = vadd.f32 %v304, %v210
        %v309 = vsel %vm218, %v290, %v278
        %v310 = vsel %vm218, %v292, %v280
        %v311 = vsel %vm218, %v294, %v282
        %v312 = vsel %vm218, %v296, %v284
        %v313 = vadd.f32 %v305, %v309
        %v314 = vadd.f32 %v306, %v310
        %v315 = vadd.f32 %v307, %v311
        %v316 = vadd.f32 %v308, %v312
        %vm317 = vcmask 130048
        %v319 = vsel %vm317, %v246, 0
        %v322 = vsel %vm317, %v247, 0
        %324 = vmatprep.subr.mxu0 0.0
        %325 = vmatpush1.msra.mxu0 %v313
        %326 = vmatprep.subr.mxu0 0.0
        %327 = vmatpush1.msra.mxu0 %v314
        %328 = vmatprep.subr.mxu0 0.0
        %329 = vmatpush1.msra.mxu0 0.0
        %330 = vmatprep.subr.mxu0 0.0
        %331 = vmatpush1.msra.mxu0 0.0
        %332 = vmatprep.subr.mxu0 0.0
        %333 = vmatpush1.msra.mxu0 0.0
        %334 = vmatprep.subr.mxu0 0.0
        %335 = vmatpush1.msra.mxu0 0.0
        %336 = vmatprep.subr.mxu0 0.0
        %337 = vmatpush1.msra.mxu0 0.0
        %338 = vmatprep.subr.mxu0 0.0
        %339 = vmatpush1.msra.mxu0 0.0
        %340 = vmatprep.subr.mxu0 0.0
        %341 = vmatpush1.msra.mxu0 0.0
        %342 = vmatprep.subr.mxu0 0.0
        %343 = vmatpush1.msra.mxu0 0.0
        %344 = vmatprep.subr.mxu0 0.0
        %345 = vmatpush1.msra.mxu0 0.0
        %346 = vmatprep.subr.mxu0 0.0
        %347 = vmatpush1.msra.mxu0 0.0
        %348 = vmatprep.subr.mxu0 0.0
        %349 = vmatpush1.msra.mxu0 0.0
        %350 = vmatprep.subr.mxu0 0.0
        %351 = vmatpush1.msra.mxu0 0.0
        %352 = vmatprep.subr.mxu0 0.0
        %353 = vmatpush1.msra.mxu0 0.0
        %354 = vmatprep.subr.mxu0 0.0
        %355 = vmatpush1.msra.mxu0 0.0
        %356 = vmatprep.subr.mxu0 0.0
        %357 = vmatpush1.msra.mxu0 0.0
        %358 = vmatprep.subr.mxu0 0.0
        %359 = vmatpush1.msra.mxu0 0.0
        %360 = vmatprep.subr.mxu0 0.0
        %361 = vmatpush1.msra.mxu0 0.0
        %362 = vmatprep.subr.mxu0 0.0
        %363 = vmatpush1.msra.mxu0 0.0
        %364 = vmatprep.subr.mxu0 0.0
        %365 = vmatpush1.msra.mxu0 0.0
        %366 = vmatprep.subr.mxu0 0.0
        %367 = vmatpush1.msra.mxu0 0.0
        %368 = vmatprep.subr.mxu0 0.0
        %369 = vmatpush1.msra.mxu0 0.0
        %370 = vmatprep.subr.mxu0 0.0
        %371 = vmatpush1.msra.mxu0 0.0
        %372 = vmatprep.subr.mxu0 0.0
        %373 = vmatpush1.msra.mxu0 0.0
        %374 = vmatprep.subr.mxu0 0.0
        %375 = vmatpush1.msra.mxu0 0.0
        %376 = vmatprep.subr.mxu0 0.0
        %377 = vmatpush1.msra.mxu0 0.0
        %378 = vmatprep.subr.mxu0 0.0
        %379 = vmatpush1.msra.mxu0 0.0
        %380 = vmatprep.subr.mxu0 0.0
        %381 = vmatpush1.msra.mxu0 0.0
        %382 = vmatprep.subr.mxu0 0.0
        %383 = vmatpush1.msra.mxu0 0.0
        %384 = vmatprep.subr.mxu0 0.0
        %385 = vmatpush1.msra.mxu0 0.0
        %386 = vmatprep.subr.mxu0 0.0
        %387 = vmatpush1.msra.mxu0 0.0
        %388 = vmatprep.mubr.f32.mxu0 0.0
        %389 = vmatmul.mubr.f32.gmra.mrb[0].mxu0 %v319
        %v390 = vpop.f32.mrb[0].mxu0
        %v391 = vadd.f32 0.0, %v390
        %v392 = vpop.f32.mrb[0].mxu0
        %393 = vmatprep.mubr.f32.mxu0 0.0
        %394 = vmatmul.mubr.f32.gmra.mrb[0].mxu0 %v322
        %v395 = vpop.f32.mrb[0].mxu0
        %v396 = vadd.f32 0.0, %v395
        %v397 = vpop.f32.mrb[0].mxu0
        %398 = vdwg.mxu0
        %399 = vmatprep.subr.mxu0 0.0
        %400 = vmatpush1.msra.mxu0 %v315
        %401 = vmatprep.subr.mxu0 0.0
        %402 = vmatpush1.msra.mxu0 %v316
        %403 = vmatprep.subr.mxu0 0.0
        %404 = vmatpush1.msra.mxu0 0.0
        %405 = vmatprep.subr.mxu0 0.0
        %406 = vmatpush1.msra.mxu0 0.0
        %407 = vmatprep.subr.mxu0 0.0
        %408 = vmatpush1.msra.mxu0 0.0
        %409 = vmatprep.subr.mxu0 0.0
        %410 = vmatpush1.msra.mxu0 0.0
        %411 = vmatprep.subr.mxu0 0.0
        %412 = vmatpush1.msra.mxu0 0.0
        %413 = vmatprep.subr.mxu0 0.0
        %414 = vmatpush1.msra.mxu0 0.0
        %415 = vmatprep.subr.mxu0 0.0
        %416 = vmatpush1.msra.mxu0 0.0
        %417 = vmatprep.subr.mxu0 0.0
        %418 = vmatpush1.msra.mxu0 0.0
        %419 = vmatprep.subr.mxu0 0.0
        %420 = vmatpush1.msra.mxu0 0.0
        %421 = vmatprep.subr.mxu0 0.0
        %422 = vmatpush1.msra.mxu0 0.0
        %423 = vmatprep.subr.mxu0 0.0
        %424 = vmatpush1.msra.mxu0 0.0
        %425 = vmatprep.subr.mxu0 0.0
        %426 = vmatpush1.msra.mxu0 0.0
        %427 = vmatprep.subr.mxu0 0.0
        %428 = vmatpush1.msra.mxu0 0.0
        %429 = vmatprep.subr.mxu0 0.0
        %430 = vmatpush1.msra.mxu0 0.0
        %431 = vmatprep.subr.mxu0 0.0
        %432 = vmatpush1.msra.mxu0 0.0
        %433 = vmatprep.subr.mxu0 0.0
        %434 = vmatpush1.msra.mxu0 0.0
        %435 = vmatprep.subr.mxu0 0.0
        %436 = vmatpush1.msra.mxu0 0.0
        %437 = vmatprep.subr.mxu0 0.0
        %438 = vmatpush1.msra.mxu0 0.0
        %439 = vmatprep.subr.mxu0 0.0
        %440 = vmatpush1.msra.mxu0 0.0
        %441 = vmatprep.subr.mxu0 0.0
        %442 = vmatpush1.msra.mxu0 0.0
        %443 = vmatprep.subr.mxu0 0.0
        %444 = vmatpush1.msra.mxu0 0.0
        %445 = vmatprep.subr.mxu0 0.0
        %446 = vmatpush1.msra.mxu0 0.0
        %447 = vmatprep.subr.mxu0 0.0
        %448 = vmatpush1.msra.mxu0 0.0
        %449 = vmatprep.subr.mxu0 0.0
        %450 = vmatpush1.msra.mxu0 0.0
        %451 = vmatprep.subr.mxu0 0.0
        %452 = vmatpush1.msra.mxu0 0.0
        %453 = vmatprep.subr.mxu0 0.0
        %454 = vmatpush1.msra.mxu0 0.0
        %455 = vmatprep.subr.mxu0 0.0
        %456 = vmatpush1.msra.mxu0 0.0
        %457 = vmatprep.subr.mxu0 0.0
        %458 = vmatpush1.msra.mxu0 0.0
        %459 = vmatprep.subr.mxu0 0.0
        %460 = vmatpush1.msra.mxu0 0.0
        %461 = vmatprep.subr.mxu0 0.0
        %462 = vmatpush1.msra.mxu0 0.0
        %463 = vmatprep.mubr.f32.mxu0 0.0
        %464 = vmatmul.mubr.f32.gmra.mrb[0].mxu0 %v319
        %v465 = vpop.f32.mrb[0].mxu0
        %v466 = vadd.f32 0.0, %v465
        %v467 = vpop.f32.mrb[0].mxu0
        %468 = vmatprep.mubr.f32.mxu0 0.0
        %469 = vmatmul.mubr.f32.gmra.mrb[0].mxu0 %v322
        %v470 = vpop.f32.mrb[0].mxu0
        %v471 = vadd.f32 0.0, %v470
        %v472 = vpop.f32.mrb[0].mxu0
        %473 = vdwg.mxu0
        %474 = vrot.lane.b32.xlu0 %v211, 16
        %v475 = vpop.permute.xlu0 %474
        %v476 = vsel %vm248, %v475, %v211
        %477 = vrot.lane.b32.xlu0 %v212, 16
        %v478 = vpop.permute.xlu0 %477
        %v479 = vsel %vm248, %v478, %v212
        %480 = vrot.lane.b32.xlu0 %v213, 16
        %v481 = vpop.permute.xlu0 %480
        %v482 = vsel %vm248, %v481, %v213
        %483 = vrot.lane.b32.xlu0 %v214, 16
        %v484 = vpop.permute.xlu0 %483
        %v485 = vsel %vm248, %v484, %v214
        %486 = vrot.lane.b32.xlu0 %v476, 16
        %v487 = vpop.permute.xlu0 %486
        %488 = vrot.lane.b32.xlu0 %v479, 16
        %v489 = vpop.permute.xlu0 %488
        %490 = vrot.lane.b32.xlu0 %v482, 16
        %v491 = vpop.permute.xlu0 %490
        %492 = vrot.lane.b32.xlu0 %v485, 16
        %v493 = vpop.permute.xlu0 %492
        %v494 = vsel %vm248, %v487, %v211
        %v495 = vsel %vm248, %v489, %v212
        %v496 = vsel %vm248, %v491, %v213
        %v497 = vsel %vm248, %v493, %v214
        %502 = vrot.lane.b32.xlu0 %v494, 127
        %v503 = vpop.permute.xlu0 %502
        %504 = vrot.lane.b32.xlu0 %v495, 127
        %v505 = vpop.permute.xlu0 %504
        %506 = vrot.lane.b32.xlu0 %v496, 127
        %v507 = vpop.permute.xlu0 %506
        %508 = vrot.lane.b32.xlu0 %v497, 127
        %v509 = vpop.permute.xlu0 %508
        %514 = vrot.lane.b32.xlu0 %v494, 113
        %v515 = vpop.permute.xlu0 %514
        %516 = vrot.lane.b32.xlu0 %v495, 113
        %v517 = vpop.permute.xlu0 %516
        %518 = vrot.lane.b32.xlu0 %v496, 113
        %v519 = vpop.permute.xlu0 %518
        %520 = vrot.lane.b32.xlu0 %v497, 113
        %v521 = vpop.permute.xlu0 %520
        %v526 = vsel %vm217, %v503, %v515
        %v527 = vsel %vm217, %v505, %v517
        %v528 = vsel %vm217, %v507, %v519
        %v529 = vsel %vm217, %v509, %v521
        %v530 = vadd.f32 %v526, %v211
        %v531 = vadd.f32 %v527, %v212
        %v532 = vadd.f32 %v528, %v213
        %v533 = vadd.f32 %v529, %v214
        %v534 = vsel %vm218, %v515, %v503
        %v535 = vsel %vm218, %v517, %v505
        %v536 = vsel %vm218, %v519, %v507
        %v537 = vsel %vm218, %v521, %v509
        %v538 = vadd.f32 %v530, %v534
        %v539 = vadd.f32 %v531, %v535
        %v540 = vadd.f32 %v532, %v536
        %v541 = vadd.f32 %v533, %v537
        %542 = vmatprep.subr.mxu0 0.0
        %543 = vmatpush1.msra.mxu0 %v538
        %544 = vmatprep.subr.mxu0 0.0
        %545 = vmatpush1.msra.mxu0 %v539
        %546 = vmatprep.subr.mxu0 0.0
        %547 = vmatpush1.msra.mxu0 0.0
        %548 = vmatprep.subr.mxu0 0.0
        %549 = vmatpush1.msra.mxu0 0.0
        %550 = vmatprep.subr.mxu0 0.0
        %551 = vmatpush1.msra.mxu0 0.0
        %552 = vmatprep.subr.mxu0 0.0
        %553 = vmatpush1.msra.mxu0 0.0
        %554 = vmatprep.subr.mxu0 0.0
        %555 = vmatpush1.msra.mxu0 0.0
        %556 = vmatprep.subr.mxu0 0.0
        %557 = vmatpush1.msra.mxu0 0.0
        %558 = vmatprep.subr.mxu0 0.0
        %559 = vmatpush1.msra.mxu0 0.0
        %560 = vmatprep.subr.mxu0 0.0
        %561 = vmatpush1.msra.mxu0 0.0
        %562 = vmatprep.subr.mxu0 0.0
        %563 = vmatpush1.msra.mxu0 0.0
        %564 = vmatprep.subr.mxu0 0.0
        %565 = vmatpush1.msra.mxu0 0.0
        %566 = vmatprep.subr.mxu0 0.0
        %567 = vmatpush1.msra.mxu0 0.0
        %568 = vmatprep.subr.mxu0 0.0
        %569 = vmatpush1.msra.mxu0 0.0
        %570 = vmatprep.subr.mxu0 0.0
        %571 = vmatpush1.msra.mxu0 0.0
        %572 = vmatprep.subr.mxu0 0.0
        %573 = vmatpush1.msra.mxu0 0.0
        %574 = vmatprep.subr.mxu0 0.0
        %575 = vmatpush1.msra.mxu0 0.0
        %576 = vmatprep.subr.mxu0 0.0
        %577 = vmatpush1.msra.mxu0 0.0
        %578 = vmatprep.subr.mxu0 0.0
        %579 = vmatpush1.msra.mxu0 0.0
        %580 = vmatprep.subr.mxu0 0.0
        %581 = vmatpush1.msra.mxu0 0.0
        %582 = vmatprep.subr.mxu0 0.0
        %583 = vmatpush1.msra.mxu0 0.0
        %584 = vmatprep.subr.mxu0 0.0
        %585 = vmatpush1.msra.mxu0 0.0
        %586 = vmatprep.subr.mxu0 0.0
        %587 = vmatpush1.msra.mxu0 0.0
        %588 = vmatprep.subr.mxu0 0.0
        %589 = vmatpush1.msra.mxu0 0.0
        %590 = vmatprep.subr.mxu0 0.0
        %591 = vmatpush1.msra.mxu0 0.0
        %592 = vmatprep.subr.mxu0 0.0
        %593 = vmatpush1.msra.mxu0 0.0
        %594 = vmatprep.subr.mxu0 0.0
        %595 = vmatpush1.msra.mxu0 0.0
        %596 = vmatprep.subr.mxu0 0.0
        %597 = vmatpush1.msra.mxu0 0.0
        %598 = vmatprep.subr.mxu0 0.0
        %599 = vmatpush1.msra.mxu0 0.0
        %600 = vmatprep.subr.mxu0 0.0
        %601 = vmatpush1.msra.mxu0 0.0
        %602 = vmatprep.subr.mxu0 0.0
        %603 = vmatpush1.msra.mxu0 0.0
        %604 = vmatprep.subr.mxu0 0.0
        %605 = vmatpush1.msra.mxu0 0.0
        %606 = vmatprep.mubr.f32.mxu0 0.0
        %607 = vmatmul.mubr.f32.gmra.mrb[0].mxu0 %v319
        %v608 = vpop.f32.mrb[0].mxu0
        %v609 = vadd.f32 0.0, %v608
        %v610 = vpop.f32.mrb[0].mxu0
        %611 = vmatprep.mubr.f32.mxu0 0.0
        %612 = vmatmul.mubr.f32.gmra.mrb[0].mxu0 %v322
        %v613 = vpop.f32.mrb[0].mxu0
        %v614 = vadd.f32 0.0, %v613
        %v615 = vpop.f32.mrb[0].mxu0
        %616 = vdwg.mxu0
        %617 = vmatprep.subr.mxu0 0.0
        %618 = vmatpush1.msra.mxu0 %v540
        %619 = vmatprep.subr.mxu0 0.0
        %620 = vmatpush1.msra.mxu0 %v541
        %621 = vmatprep.subr.mxu0 0.0
        %622 = vmatpush1.msra.mxu0 0.0
        %623 = vmatprep.subr.mxu0 0.0
        %624 = vmatpush1.msra.mxu0 0.0
        %625 = vmatprep.subr.mxu0 0.0
        %626 = vmatpush1.msra.mxu0 0.0
        %627 = vmatprep.subr.mxu0 0.0
        %628 = vmatpush1.msra.mxu0 0.0
        %629 = vmatprep.subr.mxu0 0.0
        %630 = vmatpush1.msra.mxu0 0.0
        %631 = vmatprep.subr.mxu0 0.0
        %632 = vmatpush1.msra.mxu0 0.0
        %633 = vmatprep.subr.mxu0 0.0
        %634 = vmatpush1.msra.mxu0 0.0
        %635 = vmatprep.subr.mxu0 0.0
        %636 = vmatpush1.msra.mxu0 0.0
        %637 = vmatprep.subr.mxu0 0.0
        %638 = vmatpush1.msra.mxu0 0.0
        %639 = vmatprep.subr.mxu0 0.0
        %640 = vmatpush1.msra.mxu0 0.0
        %641 = vmatprep.subr.mxu0 0.0
        %642 = vmatpush1.msra.mxu0 0.0
        %643 = vmatprep.subr.mxu0 0.0
        %644 = vmatpush1.msra.mxu0 0.0
        %645 = vmatprep.subr.mxu0 0.0
        %646 = vmatpush1.msra.mxu0 0.0
        %647 = vmatprep.subr.mxu0 0.0
        %648 = vmatpush1.msra.mxu0 0.0
        %649 = vmatprep.subr.mxu0 0.0
        %650 = vmatpush1.msra.mxu0 0.0
        %651 = vmatprep.subr.mxu0 0.0
        %652 = vmatpush1.msra.mxu0 0.0
        %653 = vmatprep.subr.mxu0 0.0
        %654 = vmatpush1.msra.mxu0 0.0
        %655 = vmatprep.subr.mxu0 0.0
        %656 = vmatpush1.msra.mxu0 0.0
        %657 = vmatprep.subr.mxu0 0.0
        %658 = vmatpush1.msra.mxu0 0.0
        %659 = vmatprep.subr.mxu0 0.0
        %660 = vmatpush1.msra.mxu0 0.0
        %661 = vmatprep.subr.mxu0 0.0
        %662 = vmatpush1.msra.mxu0 0.0
        %663 = vmatprep.subr.mxu0 0.0
        %664 = vmatpush1.msra.mxu0 0.0
        %665 = vmatprep.subr.mxu0 0.0
        %666 = vmatpush1.msra.mxu0 0.0
        %667 = vmatprep.subr.mxu0 0.0
        %668 = vmatpush1.msra.mxu0 0.0
        %669 = vmatprep.subr.mxu0 0.0
        %670 = vmatpush1.msra.mxu0 0.0
        %671 = vmatprep.subr.mxu0 0.0
        %672 = vmatpush1.msra.mxu0 0.0
        %673 = vmatprep.subr.mxu0 0.0
        %674 = vmatpush1.msra.mxu0 0.0
        %675 = vmatprep.subr.mxu0 0.0
        %676 = vmatpush1.msra.mxu0 0.0
        %677 = vmatprep.subr.mxu0 0.0
        %678 = vmatpush1.msra.mxu0 0.0
        %679 = vmatprep.subr.mxu0 0.0
        %680 = vmatpush1.msra.mxu0 0.0
        %681 = vmatprep.mubr.f32.mxu0 0.0
        %682 = vmatmul.mubr.f32.gmra.mrb[0].mxu0 %v319
        %v683 = vpop.f32.mrb[0].mxu0
        %v684 = vadd.f32 0.0, %v683
        %v685 = vpop.f32.mrb[0].mxu0
        %686 = vmatprep.mubr.f32.mxu0 0.0
        %687 = vmatmul.mubr.f32.gmra.mrb[0].mxu0 %v322
        %v688 = vpop.f32.mrb[0].mxu0
        %v689 = vadd.f32 0.0, %v688
        %v690 = vpop.f32.mrb[0].mxu0
        %691 = vdwg.mxu0
        %v692 = vmul.f32 %v207, %v207
        %v693 = vmul.f32 %v208, %v208
        %v694 = vmul.f32 %v209, %v209
        %v695 = vmul.f32 %v210, %v210
        %696 = vrot.lane.b32.xlu0 %v692, 16
        %v697 = vpop.permute.xlu0 %696
        %v698 = vsel %vm248, %v697, %v692
        %699 = vrot.lane.b32.xlu0 %v693, 16
        %v700 = vpop.permute.xlu0 %699
        %v701 = vsel %vm248, %v700, %v693
        %702 = vrot.lane.b32.xlu0 %v694, 16
        %v703 = vpop.permute.xlu0 %702
        %v704 = vsel %vm248, %v703, %v694
        %705 = vrot.lane.b32.xlu0 %v695, 16
        %v706 = vpop.permute.xlu0 %705
        %v707 = vsel %vm248, %v706, %v695
        %708 = vrot.lane.b32.xlu0 %v698, 16
        %v709 = vpop.permute.xlu0 %708
        %710 = vrot.lane.b32.xlu0 %v701, 16
        %v711 = vpop.permute.xlu0 %710
        %712 = vrot.lane.b32.xlu0 %v704, 16
        %v713 = vpop.permute.xlu0 %712
        %714 = vrot.lane.b32.xlu0 %v707, 16
        %v715 = vpop.permute.xlu0 %714
        %v716 = vsel %vm248, %v709, %v692
        %v717 = vsel %vm248, %v711, %v693
        %v718 = vsel %vm248, %v713, %v694
        %v719 = vsel %vm248, %v715, %v695
        %724 = vrot.lane.b32.xlu0 %v716, 127
        %v725 = vpop.permute.xlu0 %724
        %726 = vrot.lane.b32.xlu0 %v717, 127
        %v727 = vpop.permute.xlu0 %726
        %728 = vrot.lane.b32.xlu0 %v718, 127
        %v729 = vpop.permute.xlu0 %728
        %730 = vrot.lane.b32.xlu0 %v719, 127
        %v731 = vpop.permute.xlu0 %730
        %736 = vrot.lane.b32.xlu0 %v716, 113
        %v737 = vpop.permute.xlu0 %736
        %738 = vrot.lane.b32.xlu0 %v717, 113
        %v739 = vpop.permute.xlu0 %738
        %740 = vrot.lane.b32.xlu0 %v718, 113
        %v741 = vpop.permute.xlu0 %740
        %742 = vrot.lane.b32.xlu0 %v719, 113
        %v743 = vpop.permute.xlu0 %742
        %v748 = vsel %vm217, %v725, %v737
        %v749 = vsel %vm217, %v727, %v739
        %v750 = vsel %vm217, %v729, %v741
        %v751 = vsel %vm217, %v731, %v743
        %v752 = vadd.f32 %v748, %v692
        %v753 = vadd.f32 %v749, %v693
        %v754 = vadd.f32 %v750, %v694
        %v755 = vadd.f32 %v751, %v695
        %v756 = vsel %vm218, %v737, %v725
        %v757 = vsel %vm218, %v739, %v727
        %v758 = vsel %vm218, %v741, %v729
        %v759 = vsel %vm218, %v743, %v731
        %v760 = vadd.f32 %v752, %v756
        %v761 = vadd.f32 %v753, %v757
        %v762 = vadd.f32 %v754, %v758
        %v763 = vadd.f32 %v755, %v759
        %v764 = vmul.f32 %v211, %v211
        %v765 = vmul.f32 %v212, %v212
        %v766 = vmul.f32 %v213, %v213
        %v767 = vmul.f32 %v214, %v214
        %768 = vrot.lane.b32.xlu0 %v764, 16
        %v769 = vpop.permute.xlu0 %768
        %v770 = vsel %vm248, %v769, %v764
        %771 = vrot.lane.b32.xlu0 %v765, 16
        %v772 = vpop.permute.xlu0 %771
        %v773 = vsel %vm248, %v772, %v765
        %774 = vrot.lane.b32.xlu0 %v766, 16
        %v775 = vpop.permute.xlu0 %774
        %v776 = vsel %vm248, %v775, %v766
        %777 = vrot.lane.b32.xlu0 %v767, 16
        %v778 = vpop.permute.xlu0 %777
        %v779 = vsel %vm248, %v778, %v767
        %780 = vrot.lane.b32.xlu0 %v770, 16
        %v781 = vpop.permute.xlu0 %780
        %782 = vrot.lane.b32.xlu0 %v773, 16
        %v783 = vpop.permute.xlu0 %782
        %784 = vrot.lane.b32.xlu0 %v776, 16
        %v785 = vpop.permute.xlu0 %784
        %786 = vrot.lane.b32.xlu0 %v779, 16
        %v787 = vpop.permute.xlu0 %786
        %v788 = vsel %vm248, %v781, %v764
        %v789 = vsel %vm248, %v783, %v765
        %v790 = vsel %vm248, %v785, %v766
        %v791 = vsel %vm248, %v787, %v767
        %796 = vrot.lane.b32.xlu0 %v788, 127
        %v797 = vpop.permute.xlu0 %796
        %798 = vrot.lane.b32.xlu0 %v789, 127
        %v799 = vpop.permute.xlu0 %798
        %800 = vrot.lane.b32.xlu0 %v790, 127
        %v801 = vpop.permute.xlu0 %800
        %802 = vrot.lane.b32.xlu0 %v791, 127
        %v803 = vpop.permute.xlu0 %802
        %808 = vrot.lane.b32.xlu0 %v788, 113
        %v809 = vpop.permute.xlu0 %808
        %810 = vrot.lane.b32.xlu0 %v789, 113
        %v811 = vpop.permute.xlu0 %810
        %812 = vrot.lane.b32.xlu0 %v790, 113
        %v813 = vpop.permute.xlu0 %812
        %814 = vrot.lane.b32.xlu0 %v791, 113
        %v815 = vpop.permute.xlu0 %814
        %v820 = vsel %vm217, %v797, %v809
        %v821 = vsel %vm217, %v799, %v811
        %v822 = vsel %vm217, %v801, %v813
        %v823 = vsel %vm217, %v803, %v815
        %v824 = vadd.f32 %v820, %v764
        %v825 = vadd.f32 %v821, %v765
        %v826 = vadd.f32 %v822, %v766
        %v827 = vadd.f32 %v823, %v767
        %v828 = vsel %vm218, %v809, %v797
        %v829 = vsel %vm218, %v811, %v799
        %v830 = vsel %vm218, %v813, %v801
        %v831 = vsel %vm218, %v815, %v803
        %v832 = vadd.f32 %v824, %v828
        %v833 = vadd.f32 %v825, %v829
        %v834 = vadd.f32 %v826, %v830
        %v835 = vadd.f32 %v827, %v831
        %836 = vmatprep.subr.mxu0 0.0
        %837 = vmatpush1.msra.mxu0 %v832
        %838 = vmatprep.subr.mxu0 0.0
        %839 = vmatpush1.msra.mxu0 %v833
        %840 = vmatprep.subr.mxu0 0.0
        %841 = vmatpush1.msra.mxu0 0.0
        %842 = vmatprep.subr.mxu0 0.0
        %843 = vmatpush1.msra.mxu0 0.0
        %844 = vmatprep.subr.mxu0 0.0
        %845 = vmatpush1.msra.mxu0 0.0
        %846 = vmatprep.subr.mxu0 0.0
        %847 = vmatpush1.msra.mxu0 0.0
        %848 = vmatprep.subr.mxu0 0.0
        %849 = vmatpush1.msra.mxu0 0.0
        %850 = vmatprep.subr.mxu0 0.0
        %851 = vmatpush1.msra.mxu0 0.0
        %852 = vmatprep.subr.mxu0 0.0
        %853 = vmatpush1.msra.mxu0 0.0
        %854 = vmatprep.subr.mxu0 0.0
        %855 = vmatpush1.msra.mxu0 0.0
        %856 = vmatprep.subr.mxu0 0.0
        %857 = vmatpush1.msra.mxu0 0.0
        %858 = vmatprep.subr.mxu0 0.0
        %859 = vmatpush1.msra.mxu0 0.0
        %860 = vmatprep.subr.mxu0 0.0
        %861 = vmatpush1.msra.mxu0 0.0
        %862 = vmatprep.subr.mxu0 0.0
        %863 = vmatpush1.msra.mxu0 0.0
        %864 = vmatprep.subr.mxu0 0.0
        %865 = vmatpush1.msra.mxu0 0.0
        %866 = vmatprep.subr.mxu0 0.0
        %867 = vmatpush1.msra.mxu0 0.0
        %868 = vmatprep.subr.mxu0 0.0
        %869 = vmatpush1.msra.mxu0 0.0
        %870 = vmatprep.subr.mxu0 0.0
        %871 = vmatpush1.msra.mxu0 0.0
        %872 = vmatprep.subr.mxu0 0.0
        %873 = vmatpush1.msra.mxu0 0.0
        %874 = vmatprep.subr.mxu0 0.0
        %875 = vmatpush1.msra.mxu0 0.0
        %876 = vmatprep.subr.mxu0 0.0
        %877 = vmatpush1.msra.mxu0 0.0
        %878 = vmatprep.subr.mxu0 0.0
        %879 = vmatpush1.msra.mxu0 0.0
        %880 = vmatprep.subr.mxu0 0.0
        %881 = vmatpush1.msra.mxu0 0.0
        %882 = vmatprep.subr.mxu0 0.0
        %883 = vmatpush1.msra.mxu0 0.0
        %884 = vmatprep.subr.mxu0 0.0
        %885 = vmatpush1.msra.mxu0 0.0
        %886 = vmatprep.subr.mxu0 0.0
        %887 = vmatpush1.msra.mxu0 0.0
        %888 = vmatprep.subr.mxu0 0.0
        %889 = vmatpush1.msra.mxu0 0.0
        %890 = vmatprep.subr.mxu0 0.0
        %891 = vmatpush1.msra.mxu0 0.0
        %892 = vmatprep.subr.mxu0 0.0
        %893 = vmatpush1.msra.mxu0 0.0
        %894 = vmatprep.subr.mxu0 0.0
        %895 = vmatpush1.msra.mxu0 0.0
        %896 = vmatprep.subr.mxu0 0.0
        %897 = vmatpush1.msra.mxu0 0.0
        %898 = vmatprep.subr.mxu0 0.0
        %899 = vmatpush1.msra.mxu0 0.0
        %900 = vmatprep.mubr.f32.mxu0 0.0
        %901 = vmatmul.mubr.f32.gmra.mrb[0].mxu0 %v319
        %v902 = vpop.f32.mrb[0].mxu0
        %v903 = vadd.f32 0.0, %v902
        %v904 = vpop.f32.mrb[0].mxu0
        %905 = vmatprep.mubr.f32.mxu0 0.0
        %906 = vmatmul.mubr.f32.gmra.mrb[0].mxu0 %v322
        %v907 = vpop.f32.mrb[0].mxu0
        %v908 = vadd.f32 0.0, %v907
        %v909 = vpop.f32.mrb[0].mxu0
        %910 = vdwg.mxu0
        %911 = vmatprep.subr.mxu0 0.0
        %912 = vmatpush1.msra.mxu0 %v834
        %913 = vmatprep.subr.mxu0 0.0
        %914 = vmatpush1.msra.mxu0 %v835
        %915 = vmatprep.subr.mxu0 0.0
        %916 = vmatpush1.msra.mxu0 0.0
        %917 = vmatprep.subr.mxu0 0.0
        %918 = vmatpush1.msra.mxu0 0.0
        %919 = vmatprep.subr.mxu0 0.0
        %920 = vmatpush1.msra.mxu0 0.0
        %921 = vmatprep.subr.mxu0 0.0
        %922 = vmatpush1.msra.mxu0 0.0
        %923 = vmatprep.subr.mxu0 0.0
        %924 = vmatpush1.msra.mxu0 0.0
        %925 = vmatprep.subr.mxu0 0.0
        %926 = vmatpush1.msra.mxu0 0.0
        %927 = vmatprep.subr.mxu0 0.0
        %928 = vmatpush1.msra.mxu0 0.0
        %929 = vmatprep.subr.mxu0 0.0
        %930 = vmatpush1.msra.mxu0 0.0
        %931 = vmatprep.subr.mxu0 0.0
        %932 = vmatpush1.msra.mxu0 0.0
        %933 = vmatprep.subr.mxu0 0.0
        %934 = vmatpush1.msra.mxu0 0.0
        %935 = vmatprep.subr.mxu0 0.0
        %936 = vmatpush1.msra.mxu0 0.0
        %937 = vmatprep.subr.mxu0 0.0
        %938 = vmatpush1.msra.mxu0 0.0
        %939 = vmatprep.subr.mxu0 0.0
        %940 = vmatpush1.msra.mxu0 0.0
        %941 = vmatprep.subr.mxu0 0.0
        %942 = vmatpush1.msra.mxu0 0.0
        %943 = vmatprep.subr.mxu0 0.0
        %944 = vmatpush1.msra.mxu0 0.0
        %945 = vmatprep.subr.mxu0 0.0
        %946 = vmatpush1.msra.mxu0 0.0
        %947 = vmatprep.subr.mxu0 0.0
        %948 = vmatpush1.msra.mxu0 0.0
        %949 = vmatprep.subr.mxu0 0.0
        %950 = vmatpush1.msra.mxu0 0.0
        %951 = vmatprep.subr.mxu0 0.0
        %952 = vmatpush1.msra.mxu0 0.0
        %953 = vmatprep.subr.mxu0 0.0
        %954 = vmatpush1.msra.mxu0 0.0
        %955 = vmatprep.subr.mxu0 0.0
        %956 = vmatpush1.msra.mxu0 0.0
        %957 = vmatprep.subr.mxu0 0.0
        %958 = vmatpush1.msra.mxu0 0.0
        %959 = vmatprep.subr.mxu0 0.0
        %960 = vmatpush1.msra.mxu0 0.0
        %961 = vmatprep.subr.mxu0 0.0
        %962 = vmatpush1.msra.mxu0 0.0
        %963 = vmatprep.subr.mxu0 0.0
        %964 = vmatpush1.msra.mxu0 0.0
        %965 = vmatprep.subr.mxu0 0.0
        %966 = vmatpush1.msra.mxu0 0.0
        %967 = vmatprep.subr.mxu0 0.0
        %968 = vmatpush1.msra.mxu0 0.0
        %969 = vmatprep.subr.mxu0 0.0
        %970 = vmatpush1.msra.mxu0 0.0
        %971 = vmatprep.subr.mxu0 0.0
        %972 = vmatpush1.msra.mxu0 0.0
        %973 = vmatprep.subr.mxu0 0.0
        %974 = vmatpush1.msra.mxu0 0.0
        %975 = vmatprep.mubr.f32.mxu0 0.0
        %976 = vmatmul.mubr.f32.gmra.mrb[0].mxu0 %v319
        %v977 = vpop.f32.mrb[0].mxu0
        %v978 = vadd.f32 0.0, %v977
        %v979 = vpop.f32.mrb[0].mxu0
        %980 = vmatprep.mubr.f32.mxu0 0.0
        %981 = vmatmul.mubr.f32.gmra.mrb[0].mxu0 %v322
        %v982 = vpop.f32.mrb[0].mxu0
        %v983 = vadd.f32 0.0, %v982
        %v984 = vpop.f32.mrb[0].mxu0
        %985 = vdwg.mxu0
        %v986 = vmul.f32 %v207, %v211
        %v987 = vmul.f32 %v208, %v212
        %v988 = vmul.f32 %v209, %v213
        %v989 = vmul.f32 %v210, %v214
        %990 = vrot.lane.b32.xlu0 %v986, 16
        %v991 = vpop.permute.xlu0 %990
        %v992 = vsel %vm248, %v991, %v986
        %993 = vrot.lane.b32.xlu0 %v987, 16
        %v994 = vpop.permute.xlu0 %993
        %v995 = vsel %vm248, %v994, %v987
        %996 = vrot.lane.b32.xlu0 %v988, 16
        %v997 = vpop.permute.xlu0 %996
        %v998 = vsel %vm248, %v997, %v988
        %999 = vrot.lane.b32.xlu0 %v989, 16
        %v1000 = vpop.permute.xlu0 %999
        %v1001 = vsel %vm248, %v1000, %v989
        %1002 = vrot.lane.b32.xlu0 %v992, 16
        %v1003 = vpop.permute.xlu0 %1002
        %1004 = vrot.lane.b32.xlu0 %v995, 16
        %v1005 = vpop.permute.xlu0 %1004
        %1006 = vrot.lane.b32.xlu0 %v998, 16
        %v1007 = vpop.permute.xlu0 %1006
        %1008 = vrot.lane.b32.xlu0 %v1001, 16
        %v1009 = vpop.permute.xlu0 %1008
        %v1010 = vsel %vm248, %v1003, %v986
        %v1011 = vsel %vm248, %v1005, %v987
        %v1012 = vsel %vm248, %v1007, %v988
        %v1013 = vsel %vm248, %v1009, %v989
        %1018 = vrot.lane.b32.xlu0 %v1010, 127
        %v1019 = vpop.permute.xlu0 %1018
        %1020 = vrot.lane.b32.xlu0 %v1011, 127
        %v1021 = vpop.permute.xlu0 %1020
        %1022 = vrot.lane.b32.xlu0 %v1012, 127
        %v1023 = vpop.permute.xlu0 %1022
        %1024 = vrot.lane.b32.xlu0 %v1013, 127
        %v1025 = vpop.permute.xlu0 %1024
        %1030 = vrot.lane.b32.xlu0 %v1010, 113
        %v1031 = vpop.permute.xlu0 %1030
        %1032 = vrot.lane.b32.xlu0 %v1011, 113
        %v1033 = vpop.permute.xlu0 %1032
        %1034 = vrot.lane.b32.xlu0 %v1012, 113
        %v1035 = vpop.permute.xlu0 %1034
        %1036 = vrot.lane.b32.xlu0 %v1013, 113
        %v1037 = vpop.permute.xlu0 %1036
        %v1042 = vsel %vm217, %v1019, %v1031
        %v1043 = vsel %vm217, %v1021, %v1033
        %v1044 = vsel %vm217, %v1023, %v1035
        %v1045 = vsel %vm217, %v1025, %v1037
        %v1046 = vadd.f32 %v1042, %v986
        %v1047 = vadd.f32 %v1043, %v987
        %v1048 = vadd.f32 %v1044, %v988
        %v1049 = vadd.f32 %v1045, %v989
        %v1050 = vsel %vm218, %v1031, %v1019
        %v1051 = vsel %vm218, %v1033, %v1021
        %v1052 = vsel %vm218, %v1035, %v1023
        %v1053 = vsel %vm218, %v1037, %v1025
        %v1054 = vadd.f32 %v1046, %v1050
        %v1055 = vadd.f32 %v1047, %v1051
        %v1056 = vadd.f32 %v1048, %v1052
        %v1057 = vadd.f32 %v1049, %v1053
        %1058 = vmatprep.subr.mxu0 0.0
        %1059 = vmatpush1.msra.mxu0 %v1054
        %1060 = vmatprep.subr.mxu0 0.0
        %1061 = vmatpush1.msra.mxu0 %v1055
        %1062 = vmatprep.subr.mxu0 0.0
        %1063 = vmatpush1.msra.mxu0 0.0
        %1064 = vmatprep.subr.mxu0 0.0
        %1065 = vmatpush1.msra.mxu0 0.0
        %1066 = vmatprep.subr.mxu0 0.0
        %1067 = vmatpush1.msra.mxu0 0.0
        %1068 = vmatprep.subr.mxu0 0.0
        %1069 = vmatpush1.msra.mxu0 0.0
        %1070 = vmatprep.subr.mxu0 0.0
        %1071 = vmatpush1.msra.mxu0 0.0
        %1072 = vmatprep.subr.mxu0 0.0
        %1073 = vmatpush1.msra.mxu0 0.0
        %1074 = vmatprep.subr.mxu0 0.0
        %1075 = vmatpush1.msra.mxu0 0.0
        %1076 = vmatprep.subr.mxu0 0.0
        %1077 = vmatpush1.msra.mxu0 0.0
        %1078 = vmatprep.subr.mxu0 0.0
        %1079 = vmatpush1.msra.mxu0 0.0
        %1080 = vmatprep.subr.mxu0 0.0
        %1081 = vmatpush1.msra.mxu0 0.0
        %1082 = vmatprep.subr.mxu0 0.0
        %1083 = vmatpush1.msra.mxu0 0.0
        %1084 = vmatprep.subr.mxu0 0.0
        %1085 = vmatpush1.msra.mxu0 0.0
        %1086 = vmatprep.subr.mxu0 0.0
        %1087 = vmatpush1.msra.mxu0 0.0
        %1088 = vmatprep.subr.mxu0 0.0
        %1089 = vmatpush1.msra.mxu0 0.0
        %1090 = vmatprep.subr.mxu0 0.0
        %1091 = vmatpush1.msra.mxu0 0.0
        %1092 = vmatprep.subr.mxu0 0.0
        %1093 = vmatpush1.msra.mxu0 0.0
        %1094 = vmatprep.subr.mxu0 0.0
        %1095 = vmatpush1.msra.mxu0 0.0
        %1096 = vmatprep.subr.mxu0 0.0
        %1097 = vmatpush1.msra.mxu0 0.0
        %1098 = vmatprep.subr.mxu0 0.0
        %1099 = vmatpush1.msra.mxu0 0.0
        %1100 = vmatprep.subr.mxu0 0.0
        %1101 = vmatpush1.msra.mxu0 0.0
        %1102 = vmatprep.subr.mxu0 0.0
        %1103 = vmatpush1.msra.mxu0 0.0
        %1104 = vmatprep.subr.mxu0 0.0
        %1105 = vmatpush1.msra.mxu0 0.0
        %1106 = vmatprep.subr.mxu0 0.0
        %1107 = vmatpush1.msra.mxu0 0.0
        %1108 = vmatprep.subr.mxu0 0.0
        %1109 = vmatpush1.msra.mxu0 0.0
        %1110 = vmatprep.subr.mxu0 0.0
        %1111 = vmatpush1.msra.mxu0 0.0
        %1112 = vmatprep.subr.mxu0 0.0
        %1113 = vmatpush1.msra.mxu0 0.0
        %1114 = vmatprep.subr.mxu0 0.0
        %1115 = vmatpush1.msra.mxu0 0.0
        %1116 = vmatprep.subr.mxu0 0.0
        %1117 = vmatpush1.msra.mxu0 0.0
        %1118 = vmatprep.subr.mxu0 0.0
        %1119 = vmatpush1.msra.mxu0 0.0
        %1120 = vmatprep.subr.mxu0 0.0
        %1121 = vmatpush1.msra.mxu0 0.0
        %1122 = vmatprep.mubr.f32.mxu0 0.0
        %1123 = vmatmul.mubr.f32.gmra.mrb[0].mxu0 %v319
        %v1124 = vpop.f32.mrb[0].mxu0
        %v1125 = vadd.f32 0.0, %v1124
        %v1126 = vpop.f32.mrb[0].mxu0
        %1127 = vmatprep.mubr.f32.mxu0 0.0
        %1128 = vmatmul.mubr.f32.gmra.mrb[0].mxu0 %v322
        %v1129 = vpop.f32.mrb[0].mxu0
        %v1130 = vadd.f32 0.0, %v1129
        %v1131 = vpop.f32.mrb[0].mxu0
        %1132 = vdwg.mxu0
        %1133 = vmatprep.subr.mxu0 0.0
        %1134 = vmatpush1.msra.mxu0 %v1056
        %1135 = vmatprep.subr.mxu0 0.0
        %1136 = vmatpush1.msra.mxu0 %v1057
        %1137 = vmatprep.subr.mxu0 0.0
        %1138 = vmatpush1.msra.mxu0 0.0
        %1139 = vmatprep.subr.mxu0 0.0
        %1140 = vmatpush1.msra.mxu0 0.0
        %1141 = vmatprep.subr.mxu0 0.0
        %1142 = vmatpush1.msra.mxu0 0.0
        %1143 = vmatprep.subr.mxu0 0.0
        %1144 = vmatpush1.msra.mxu0 0.0
        %1145 = vmatprep.subr.mxu0 0.0
        %1146 = vmatpush1.msra.mxu0 0.0
        %1147 = vmatprep.subr.mxu0 0.0
        %1148 = vmatpush1.msra.mxu0 0.0
        %1149 = vmatprep.subr.mxu0 0.0
        %1150 = vmatpush1.msra.mxu0 0.0
        %1151 = vmatprep.subr.mxu0 0.0
        %1152 = vmatpush1.msra.mxu0 0.0
        %1153 = vmatprep.subr.mxu0 0.0
        %1154 = vmatpush1.msra.mxu0 0.0
        %1155 = vmatprep.subr.mxu0 0.0
        %1156 = vmatpush1.msra.mxu0 0.0
        %1157 = vmatprep.subr.mxu0 0.0
        %1158 = vmatpush1.msra.mxu0 0.0
        %1159 = vmatprep.subr.mxu0 0.0
        %1160 = vmatpush1.msra.mxu0 0.0
        %1161 = vmatprep.subr.mxu0 0.0
        %1162 = vmatpush1.msra.mxu0 0.0
        %1163 = vmatprep.subr.mxu0 0.0
        %1164 = vmatpush1.msra.mxu0 0.0
        %1165 = vmatprep.subr.mxu0 0.0
        %1166 = vmatpush1.msra.mxu0 0.0
        %1167 = vmatprep.subr.mxu0 0.0
        %1168 = vmatpush1.msra.mxu0 0.0
        %1169 = vmatprep.subr.mxu0 0.0
        %1170 = vmatpush1.msra.mxu0 0.0
        %1171 = vmatprep.subr.mxu0 0.0
        %1172 = vmatpush1.msra.mxu0 0.0
        %1173 = vmatprep.subr.mxu0 0.0
        %1174 = vmatpush1.msra.mxu0 0.0
        %1175 = vmatprep.subr.mxu0 0.0
        %1176 = vmatpush1.msra.mxu0 0.0
        %1177 = vmatprep.subr.mxu0 0.0
        %1178 = vmatpush1.msra.mxu0 0.0
        %1179 = vmatprep.subr.mxu0 0.0
        %1180 = vmatpush1.msra.mxu0 0.0
        %1181 = vmatprep.subr.mxu0 0.0
        %1182 = vmatpush1.msra.mxu0 0.0
        %1183 = vmatprep.subr.mxu0 0.0
        %1184 = vmatpush1.msra.mxu0 0.0
        %1185 = vmatprep.subr.mxu0 0.0
        %1186 = vmatpush1.msra.mxu0 0.0
        %1187 = vmatprep.subr.mxu0 0.0
        %1188 = vmatpush1.msra.mxu0 0.0
        %1189 = vmatprep.subr.mxu0 0.0
        %1190 = vmatpush1.msra.mxu0 0.0
        %1191 = vmatprep.subr.mxu0 0.0
        %1192 = vmatpush1.msra.mxu0 0.0
        %1193 = vmatprep.subr.mxu0 0.0
        %1194 = vmatpush1.msra.mxu0 0.0
        %1195 = vmatprep.subr.mxu0 0.0
        %1196 = vmatpush1.msra.mxu0 0.0
        %1197 = vmatprep.mubr.f32.mxu0 0.0
        %1198 = vmatmul.mubr.f32.gmra.mrb[0].mxu0 %v319
        %v1199 = vpop.f32.mrb[0].mxu0
        %v1200 = vadd.f32 0.0, %v1199
        %v1201 = vpop.f32.mrb[0].mxu0
        %1202 = vmatprep.mubr.f32.mxu0 0.0
        %1203 = vmatmul.mubr.f32.gmra.mrb[0].mxu0 %v322
        %v1204 = vpop.f32.mrb[0].mxu0
        %v1205 = vadd.f32 0.0, %v1204
        %v1206 = vpop.f32.mrb[0].mxu0
        %1207 = vdwg.mxu0
        %v1208 = vmul.f32 %v391, %v609
        %v1209 = vmul.f32 %v396, %v614
        %v1210 = vmul.f32 %v466, %v684
        %v1211 = vmul.f32 %v471, %v689
        %v1212 = vadd.f32 %v1208, %v1208
        %v1213 = vadd.f32 %v1209, %v1209
        %v1214 = vadd.f32 %v1210, %v1210
        %v1215 = vadd.f32 %v1211, %v1211
        %v1216 = vadd.f32 %v1212, 0.0081
        %v1217 = vadd.f32 %v1213, 0.0081
        %v1218 = vadd.f32 %v1214, 0.0081
        %v1219 = vadd.f32 %v1215, 0.0081
        %v1220 = vmul.f32 %v1125, 18.0
        %v1221 = vmul.f32 %v1130, 18.0
        %v1222 = vmul.f32 %v1200, 18.0
        %v1223 = vmul.f32 %v1205, 18.0
        %v1224 = vsub.f32 %v1220, %v1212
        %v1225 = vsub.f32 %v1221, %v1213
        %v1226 = vsub.f32 %v1222, %v1214
        %v1227 = vsub.f32 %v1223, %v1215
        %v1228 = vadd.f32 %v1224, 0.0729
        %v1229 = vadd.f32 %v1225, 0.0729
        %v1230 = vadd.f32 %v1226, 0.0729
        %v1231 = vadd.f32 %v1227, 0.0729
        %v1232 = vmul.f32 %v1216, %v1228
        %v1233 = vmul.f32 %v1217, %v1229
        %v1234 = vmul.f32 %v1218, %v1230
        %v1235 = vmul.f32 %v1219, %v1231
        %v1236 = vmul.f32 %v391, %v391
        %v1237 = vmul.f32 %v396, %v396
        %v1238 = vmul.f32 %v466, %v466
        %v1239 = vmul.f32 %v471, %v471
        %v1240 = vmul.f32 %v609, %v609
        %v1241 = vmul.f32 %v614, %v614
        %v1242 = vmul.f32 %v684, %v684
        %v1243 = vmul.f32 %v689, %v689
        %v1244 = vadd.f32 %v1236, %v1240
        %v1245 = vadd.f32 %v1237, %v1241
        %v1246 = vadd.f32 %v1238, %v1242
        %v1247 = vadd.f32 %v1239, %v1243
        %v1248 = vadd.f32 %v1244, 0.0081
        %v1249 = vadd.f32 %v1245, 0.0081
        %v1250 = vadd.f32 %v1246, 0.0081
        %v1251 = vadd.f32 %v1247, 0.0081
        %1252 = vmatprep.subr.mxu0 0.0
        %1253 = vmatpush1.msra.mxu0 %v760
        %1254 = vmatprep.subr.mxu0 0.0
        %1255 = vmatpush1.msra.mxu0 %v761
        %1256 = vmatprep.subr.mxu0 0.0
        %1257 = vmatpush1.msra.mxu0 0.0
        %1258 = vmatprep.subr.mxu0 0.0
        %1259 = vmatpush1.msra.mxu0 0.0
        %1260 = vmatprep.subr.mxu0 0.0
        %1261 = vmatpush1.msra.mxu0 0.0
        %1262 = vmatprep.subr.mxu0 0.0
        %1263 = vmatpush1.msra.mxu0 0.0
        %1264 = vmatprep.subr.mxu0 0.0
        %1265 = vmatpush1.msra.mxu0 0.0
        %1266 = vmatprep.subr.mxu0 0.0
        %1267 = vmatpush1.msra.mxu0 0.0
        %1268 = vmatprep.subr.mxu0 0.0
        %1269 = vmatpush1.msra.mxu0 0.0
        %1270 = vmatprep.subr.mxu0 0.0
        %1271 = vmatpush1.msra.mxu0 0.0
        %1272 = vmatprep.subr.mxu0 0.0
        %1273 = vmatpush1.msra.mxu0 0.0
        %1274 = vmatprep.subr.mxu0 0.0
        %1275 = vmatpush1.msra.mxu0 0.0
        %1276 = vmatprep.subr.mxu0 0.0
        %1277 = vmatpush1.msra.mxu0 0.0
        %1278 = vmatprep.subr.mxu0 0.0
        %1279 = vmatpush1.msra.mxu0 0.0
        %1280 = vmatprep.subr.mxu0 0.0
        %1281 = vmatpush1.msra.mxu0 0.0
        %1282 = vmatprep.subr.mxu0 0.0
        %1283 = vmatpush1.msra.mxu0 0.0
        %1284 = vmatprep.subr.mxu0 0.0
        %1285 = vmatpush1.msra.mxu0 0.0
        %1286 = vmatprep.subr.mxu0 0.0
        %1287 = vmatpush1.msra.mxu0 0.0
        %1288 = vmatprep.subr.mxu0 0.0
        %1289 = vmatpush1.msra.mxu0 0.0
        %1290 = vmatprep.subr.mxu0 0.0
        %1291 = vmatpush1.msra.mxu0 0.0
        %1292 = vmatprep.subr.mxu0 0.0
        %1293 = vmatpush1.msra.mxu0 0.0
        %1294 = vmatprep.subr.mxu0 0.0
        %1295 = vmatpush1.msra.mxu0 0.0
        %1296 = vmatprep.subr.mxu0 0.0
        %1297 = vmatpush1.msra.mxu0 0.0
        %1298 = vmatprep.subr.mxu0 0.0
        %1299 = vmatpush1.msra.mxu0 0.0
        %1300 = vmatprep.subr.mxu0 0.0
        %1301 = vmatpush1.msra.mxu0 0.0
        %1302 = vmatprep.subr.mxu0 0.0
        %1303 = vmatpush1.msra.mxu0 0.0
        %1304 = vmatprep.subr.mxu0 0.0
        %1305 = vmatpush1.msra.mxu0 0.0
        %1306 = vmatprep.subr.mxu0 0.0
        %1307 = vmatpush1.msra.mxu0 0.0
        %1308 = vmatprep.subr.mxu0 0.0
        %1309 = vmatpush1.msra.mxu0 0.0
        %1310 = vmatprep.subr.mxu0 0.0
        %1311 = vmatpush1.msra.mxu0 0.0
        %1312 = vmatprep.subr.mxu0 0.0
        %1313 = vmatpush1.msra.mxu0 0.0
        %1314 = vmatprep.subr.mxu0 0.0
        %1315 = vmatpush1.msra.mxu0 0.0
        %1316 = vmatprep.mubr.f32.mxu0 0.0
        %1317 = vmatmul.mubr.f32.gmra.mrb[0].mxu0 %v319
        %v1318 = vpop.f32.mrb[0].mxu0
        %v1319 = vadd.f32 %v903, %v1318
        %v1320 = vpop.f32.mrb[0].mxu0
        %1321 = vmatprep.mubr.f32.mxu0 0.0
        %1322 = vmatmul.mubr.f32.gmra.mrb[0].mxu0 %v322
        %v1323 = vpop.f32.mrb[0].mxu0
        %v1324 = vadd.f32 %v908, %v1323
        %v1325 = vpop.f32.mrb[0].mxu0
        %1326 = vdwg.mxu0
        %1327 = vmatprep.subr.mxu0 0.0
        %1328 = vmatpush1.msra.mxu0 %v762
        %1329 = vmatprep.subr.mxu0 0.0
        %1330 = vmatpush1.msra.mxu0 %v763
        %1331 = vmatprep.subr.mxu0 0.0
        %1332 = vmatpush1.msra.mxu0 0.0
        %1333 = vmatprep.subr.mxu0 0.0
        %1334 = vmatpush1.msra.mxu0 0.0
        %1335 = vmatprep.subr.mxu0 0.0
        %1336 = vmatpush1.msra.mxu0 0.0
        %1337 = vmatprep.subr.mxu0 0.0
        %1338 = vmatpush1.msra.mxu0 0.0
        %1339 = vmatprep.subr.mxu0 0.0
        %1340 = vmatpush1.msra.mxu0 0.0
        %1341 = vmatprep.subr.mxu0 0.0
        %1342 = vmatpush1.msra.mxu0 0.0
        %1343 = vmatprep.subr.mxu0 0.0
        %1344 = vmatpush1.msra.mxu0 0.0
        %1345 = vmatprep.subr.mxu0 0.0
        %1346 = vmatpush1.msra.mxu0 0.0
        %1347 = vmatprep.subr.mxu0 0.0
        %1348 = vmatpush1.msra.mxu0 0.0
        %1349 = vmatprep.subr.mxu0 0.0
        %1350 = vmatpush1.msra.mxu0 0.0
        %1351 = vmatprep.subr.mxu0 0.0
        %1352 = vmatpush1.msra.mxu0 0.0
        %1353 = vmatprep.subr.mxu0 0.0
        %1354 = vmatpush1.msra.mxu0 0.0
        %1355 = vmatprep.subr.mxu0 0.0
        %1356 = vmatpush1.msra.mxu0 0.0
        %1357 = vmatprep.subr.mxu0 0.0
        %1358 = vmatpush1.msra.mxu0 0.0
        %1359 = vmatprep.subr.mxu0 0.0
        %1360 = vmatpush1.msra.mxu0 0.0
        %1361 = vmatprep.subr.mxu0 0.0
        %1362 = vmatpush1.msra.mxu0 0.0
        %1363 = vmatprep.subr.mxu0 0.0
        %1364 = vmatpush1.msra.mxu0 0.0
        %1365 = vmatprep.subr.mxu0 0.0
        %1366 = vmatpush1.msra.mxu0 0.0
        %1367 = vmatprep.subr.mxu0 0.0
        %1368 = vmatpush1.msra.mxu0 0.0
        %1369 = vmatprep.subr.mxu0 0.0
        %1370 = vmatpush1.msra.mxu0 0.0
        %1371 = vmatprep.subr.mxu0 0.0
        %1372 = vmatpush1.msra.mxu0 0.0
        %1373 = vmatprep.subr.mxu0 0.0
        %1374 = vmatpush1.msra.mxu0 0.0
        %1375 = vmatprep.subr.mxu0 0.0
        %1376 = vmatpush1.msra.mxu0 0.0
        %1377 = vmatprep.subr.mxu0 0.0
        %1378 = vmatpush1.msra.mxu0 0.0
        %1379 = vmatprep.subr.mxu0 0.0
        %1380 = vmatpush1.msra.mxu0 0.0
        %1381 = vmatprep.subr.mxu0 0.0
        %1382 = vmatpush1.msra.mxu0 0.0
        %1383 = vmatprep.subr.mxu0 0.0
        %1384 = vmatpush1.msra.mxu0 0.0
        %1385 = vmatprep.subr.mxu0 0.0
        %1386 = vmatpush1.msra.mxu0 0.0
        %1387 = vmatprep.subr.mxu0 0.0
        %1388 = vmatpush1.msra.mxu0 0.0
        %1389 = vmatprep.subr.mxu0 0.0
        %1390 = vmatpush1.msra.mxu0 0.0
        %1391 = vmatprep.mubr.f32.mxu0 0.0
        %1392 = vmatmul.mubr.f32.gmra.mrb[0].mxu0 %v319
        %v1393 = vpop.f32.mrb[0].mxu0
        %v1394 = vadd.f32 %v978, %v1393
        %v1395 = vpop.f32.mrb[0].mxu0
        %1396 = vmatprep.mubr.f32.mxu0 0.0
        %1397 = vmatmul.mubr.f32.gmra.mrb[0].mxu0 %v322
        %v1398 = vpop.f32.mrb[0].mxu0
        %v1399 = vadd.f32 %v983, %v1398
        %v1400 = vpop.f32.mrb[0].mxu0
        %1401 = vdwg.mxu0
        %v1402 = vmul.f32 %v1319, 9.0
        %v1403 = vmul.f32 %v1324, 9.0
        %v1404 = vmul.f32 %v1394, 9.0
        %v1405 = vmul.f32 %v1399, 9.0
        %v1406 = vsub.f32 %v1402, %v1244
        %v1407 = vsub.f32 %v1403, %v1245
        %v1408 = vsub.f32 %v1404, %v1246
        %v1409 = vsub.f32 %v1405, %v1247
        %v1410 = vadd.f32 %v1406, 0.0729
        %v1411 = vadd.f32 %v1407, 0.0729
        %v1412 = vadd.f32 %v1408, 0.0729
        %v1413 = vadd.f32 %v1409, 0.0729
        %v1414 = vmul.f32 %v1248, %v1410
        %v1415 = vmul.f32 %v1249, %v1411
        %v1416 = vmul.f32 %v1250, %v1412
        %v1417 = vmul.f32 %v1251, %v1413
        %v1418 = vrcp.pop %v1414
        %v1419 = vrcp.pop %v1415
        %v1420 = vrcp.pop %v1416
        %v1421 = vrcp.pop %v1417
        %v1422 = vmul.f32 %v1414, %v1418
        %v1423 = vmul.f32 %v1415, %v1419
        %v1424 = vmul.f32 %v1416, %v1420
        %v1425 = vmul.f32 %v1417, %v1421
        %v1426 = vsub.f32 2.0, %v1422
        %v1427 = vsub.f32 2.0, %v1423
        %v1428 = vsub.f32 2.0, %v1424
        %v1429 = vsub.f32 2.0, %v1425
        %v1430 = vmul.f32 %v1418, %v1426
        %v1431 = vmul.f32 %v1419, %v1427
        %v1432 = vmul.f32 %v1420, %v1428
        %v1433 = vmul.f32 %v1421, %v1429
        %v1434 = vmul.f32 %v1232, %v1430
        %v1435 = vmul.f32 %v1233, %v1431
        %v1436 = vmul.f32 %v1234, %v1432
        %v1437 = vmul.f32 %v1235, %v1433
        %v1438 = vsub.f32 1.0, %v1434
        %v1439 = vsub.f32 1.0, %v1435
        %v1440 = vsub.f32 1.0, %v1436
        %v1441 = vsub.f32 1.0, %v1437
        %v1442 = vmul.f32 %v1438, 0.5
        %v1443 = vmul.f32 %v1439, 0.5
        %v1444 = vmul.f32 %v1440, 0.5
        %v1445 = vmul.f32 %v1441, 0.5
        %v1446 = vmax.f32 %v1442, 0.0
        %v1447 = vmax.f32 %v1443, 0.0
        %v1448 = vmax.f32 %v1444, 0.0
        %v1449 = vmax.f32 %v1445, 0.0
        %v1450 = vmin.f32 %v1446, 1.0
        %v1451 = vmin.f32 %v1447, 1.0
        %v1452 = vmin.f32 %v1448, 1.0
        %v1453 = vmin.f32 %v1449, 1.0
        %1454 = vst.msk [vmem:[%s203] sm:$0xff] %vm317, %v1450
        %1455 = vst.msk [vmem:[%s203 + $0x8] sm:$0xff] %vm317, %v1451
        %1456 = vst.msk [vmem:[%s203 + $0x10] sm:$0xff] %vm317, %v1452
        %1457 = vst.msk [vmem:[%s203 + $0x18] sm:$0xff] %vm317, %v1453
        %s1458 = sand.u32 %s82, 1
        %s1459 = scalar_lea.sflag [#allocation4], %s1458
        %s1460 = sand.u32 %s82, 1
        %s1461 = smul.addr %s1460, 32
        %s1462 = scalar_lea.vmem [#allocation7], %s1461
        // Predicated region
        $region37: #{ssim_pallas.1} parent=27 // pred_check
          %p1463 = pneg %p92
        $region38: #{ssim_pallas.1} parent=27 // pred_check_branch
          %1465 = sbr.rel (%p1463) target = $region40
        $region39: #{ssim_pallas.1} parent=27 // pred_region
          %s1466 = smul.u32 2, %s22
          %s1468 = ssub.s32 512, 512
          %1469 = vsyncadd %s1459, %s1468
          %s1470 = smul.addr %s1466, 2
          %s1471 = smul.addr %s1470, 128
          %s1472 = scalar_lea.hbm %s2, %s1471
          %s1473 = sshll.u32 %s1462, 4
          %s1474 = int_to_ptr.vmem [resolvable:$true] %s1473
          %1479 = dma.vmem_to_hbm [thread:$0]  %s1474, 512, %s1472, %s1459, 128, 128, 8
        $region40: #{ssim_pallas.1} parent=27 // pred_fallthru
          _
      $region28: #{ssim_pallas.1} parent=5 // pred_fallthru
        _
      %p1480 = scmp.le.s32.totalorder 2, %s17
      // Predicated region
      $region41: #{ssim_pallas.1} parent=5 // pred_check
        %p1481 = pneg %p1480
      $region42: #{ssim_pallas.1} parent=5 // pred_check_branch
        %1483 = sbr.rel (%p1481) target = $region44
      $region43: #{ssim_pallas.1} parent=5 // pred_region
        %s1484 = ssub.s32 %s17, 2
        // Predicated region
        $region45: #{ssim_pallas.1} parent=43 // pred_check
          %p1485 = pneg %p98
        $region46: #{ssim_pallas.1} parent=43 // pred_check_branch
          %1487 = sbr.rel (%p1485) target = $region48
        $region47: #{ssim_pallas.1} parent=43 // pred_region
          %s1488 = sand.u32 %s83, 1
          %s1489 = scalar_lea.sflag [#allocation4], %s1488
          %s1490 = sand.u32 %s83, 1
          %s1491 = smul.addr %s1490, 32
          %s1492 = scalar_lea.vmem [#allocation7], %s1491
          %1493 = dma.done %s1489, 512
        $region48: #{ssim_pallas.1} parent=43 // pred_fallthru
          _
      $region44: #{ssim_pallas.1} parent=5 // pred_fallthru
        _
    $region6: #{ssim_pallas.1} parent=1 // loop_footer
      %s21 = sadd.s32 1, %s17
    $region7: #{ssim_pallas.1} parent=1 // loop_footer_branch
      %16 = sbr.rel target = $region3
    $region8: #{ssim_pallas.1} parent=1 // loop_exit
      _
    %1494 = vsyncpa [#allocation3], 1
    %s1495 = scalar_lea.sflag [#allocation3], 1
    %1496 = vsyncpa %s1495, 1
    %1497 = vsyncpa [#allocation6], 1
    %s1498 = scalar_lea.sflag [#allocation6], 1
    %1499 = vsyncpa %s1498, 1
    %1500 = vsyncpa [#allocation4], 1
    %s1501 = scalar_lea.sflag [#allocation4], 1
    %1502 = vsyncpa %s1501, 1

</llo_original>
